<compile_context>
chip_gen: v7x
topology: tpu7x:2x2x1
jax: 0.10.0
libtpu: 0.0.40
codegen_flags: <defaults>
</compile_context>

<pallas_src>
import math

import jax
import jax.numpy as jnp
from jax.experimental import pallas as pl
from jax.experimental.pallas import tpu as pltpu  # noqa: F401  (kept for TPU-specific extensions)


def _decode_seq_kernel(x_ref, h0_ref, wih_ref, whh_ref, bx_ref, bhn_ref,
                       wout_ref, bout_ref, o_ref):
    # x_ref:    [B, S, Din]   native batch-major input
    # h0_ref:   [B, Hp]       initial hidden state, zero-padded to Hp lanes
    # wih_ref:  [Din, 3*Hp]   W_ih^T with each gate (r,z,n) in its own 128-lane slot
    # whh_ref:  [Hp, 3*Hp]    W_hh^T, same gate padding; rows H:Hp are zero
    # bx_ref:   [1, 3*Hp]     b_ih (+ b_hh for the r,z gates), gate-padded
    # bhn_ref:  [1, Hp]       b_hh n-gate slice, padded
    # wout_ref: [Hp, Dout]    W_out^T, rows H:Hp zero
    # bout_ref: [1, Dout]
    # o_ref:    [B, S, Dout]  native batch-major output
    B, S, Din = x_ref.shape
    Hp = h0_ref.shape[1]
    Dout = o_ref.shape[2]

    def sigmoid(v):
        # One EUP op per gate instead of exp + divide.
        return 0.5 * jnp.tanh(0.5 * v) + 0.5

    # ---- 1) Fused input-gate projection for ALL (b, t): a single matmul. ------
    x_all = x_ref[...].astype(jnp.float32).reshape(B * S, Din)          # [B*S, Din]
    gx_all = jnp.dot(x_all, wih_ref[...], preferred_element_type=jnp.float32)
    gx_all = (gx_all + bx_ref[...]).reshape(B, S, 3 * Hp)               # [B, S, 3Hp]
    # Off the serial chain: per-step gate inputs (loop below is fully unrolled).
    gx_steps = [gx_all[:, t, :] for t in range(S)]                      # each [B, 3Hp]

    # ---- 2) GRU recurrence: h carried in vregs, loop-invariants hoisted. ------
    whh = whh_ref[...]                                                  # [Hp, 3Hp]
    bhn = bhn_ref[...]                                                  # [1, Hp]
    h = h0_ref[...].astype(jnp.float32)                                 # [B, Hp]
    hs = []
    for t in range(S):                                                  # static, unrolled
        gx = gx_steps[t]
        gh = jnp.dot(h, whh, preferred_element_type=jnp.float32)        # [B, 3Hp]
        r = sigmoid(gx[:, 0:Hp] + gh[:, 0:Hp])
        z = sigmoid(gx[:, Hp:2 * Hp] + gh[:, Hp:2 * Hp])
        n = jnp.tanh(gx[:, 2 * Hp:3 * Hp] + r * (gh[:, 2 * Hp:3 * Hp] + bhn))
        h = (1.0 - z) * n + z * h                                       # padded lanes stay 0
        hs.append(h)

    # ---- 3) Output head: Linear + Tanh as ONE matmul over all (b, t). ---------
    h_all = jnp.stack(hs, axis=1).reshape(B * S, Hp)                    # [B*S, Hp]
    out = jnp.tanh(jnp.dot(h_all, wout_ref[...], preferred_element_type=jnp.float32)
                   + bout_ref[...])                                     # [B*S, Dout]
    o_ref[...] = out.reshape(B, S, Dout).astype(o_ref.dtype)


def decode_seq_pallas(hi_data, hidden, w_ih, w_hh, b_ih, b_hh, w_out, b_out):
    """hi_data: [B, S, Din], hidden: [B, H]. Returns [B, S, Dout] (== DecodeSeq.forward)."""
    B, S, Din = hi_data.shape
    H = hidden.shape[1]
    Dout = w_out.shape[0]
    Hp = ((H + 127) // 128) * 128          # each gate gets its own 128-lane-aligned slot
    f32 = jnp.float32

    # --- one-time wrapper-side weight prep (transpose to [K, N], pad per gate,
    #     fold the r/z halves of b_hh into b_ih) --------------------------------
    def gates_T_padded(w, k_rows):
        # w: [3H, K] (PyTorch layout, gate order r, z, n) -> [k_rows, 3*Hp]
        K = w.shape[1]
        out = jnp.zeros((k_rows, 3 * Hp), f32)
        for g in range(3):
            out = out.at[:K, g * Hp:g * Hp + H].set(w[g * H:(g + 1) * H, :].astype(f32).T)
        return out

    wih_t = gates_T_padded(w_ih, Din)      # [Din, 3*Hp]
    whh_t = gates_T_padded(w_hh, Hp)       # [Hp,  3*Hp]  (rows H:Hp zero)

    bx = jnp.zeros((1, 3 * Hp), f32)
    for g in range(3):
        bg = b_ih[g * H:(g + 1) * H].astype(f32)
        if g < 2:                          # r, z: b_hh adds to the same pre-activation
            bg = bg + b_hh[g * H:(g + 1) * H].astype(f32)
        bx = bx.at[0, g * Hp:g * Hp + H].set(bg)
    bhn = jnp.zeros((1, Hp), f32).at[0, :H].set(b_hh[2 * H:3 * H].astype(f32))

    wout_t = jnp.zeros((Hp, Dout), f32).at[:H, :].set(w_out.astype(f32).T)
    bout = b_out.astype(f32).reshape(1, Dout)

    h0p = jnp.zeros((B, Hp), f32).at[:, :H].set(hidden.astype(f32))

    # Single pallas_call, no grid: total footprint is a few KB; the GRU recurrence
    # is inherently sequential, so there is nothing to shard across cores at B=2.
    return pl.pallas_call(
        _decode_seq_kernel,
        out_shape=jax.ShapeDtypeStruct((B, S, Dout), hi_data.dtype),
    )(hi_data, h0p, wih_t, whh_t, bx, bhn, wout_t, bout)


def _reference(hi_data, hidden, w_ih, w_hh, b_ih, b_hh, w_out, b_out):
    """Pure-JAX reference mirroring the PyTorch DecodeSeq.forward."""
    x = jnp.transpose(hi_data, (1, 0, 2))                # [S, B, Din] (time-major like nn.GRU)
    H = hidden.shape[1]

    def step(h, x_t):
        gx = x_t @ w_ih.T + b_ih
        gh = h @ w_hh.T + b_hh
        r = jax.nn.sigmoid(gx[:, :H] + gh[:, :H])
        z = jax.nn.sigmoid(gx[:, H:2 * H] + gh[:, H:2 * H])
        n = jnp.tanh(gx[:, 2 * H:] + r * gh[:, 2 * H:])
        h_new = (1.0 - z) * n + z * h
        return h_new, h_new

    _, hs = jax.lax.scan(step, hidden, x)                # [S, B, H]
    latent = jnp.transpose(hs, (1, 0, 2))                # [B, S, H]
    return jnp.tanh(latent @ w_out.T + b_out)            # [B, S, Dout]


if __name__ == "__main__":
    # Shapes implied by the module defaults: dim_seq_in=5, rnn_out=40, dim_out=5.
    B, S = 2, 8
    dim_seq_in, rnn_out, dim_out = 5, 40, 5

    root = jax.random.PRNGKey(0)
    keys = jax.random.split(root, 7)

    hi_data = jax.random.normal(keys[0], (B, S, dim_seq_in), jnp.float32)
    hidden = jax.random.normal(keys[1], (B, rnn_out), jnp.float32)

    # GRU params in PyTorch layout / gate order (r, z, n), uniform(-1/sqrt(H), 1/sqrt(H)).
    bound = 1.0 / math.sqrt(rnn_out)
    w_ih = jax.random.uniform(keys[2], (3 * rnn_out, dim_seq_in), jnp.float32, -bound, bound)
    w_hh = jax.random.uniform(keys[3], (3 * rnn_out, rnn_out), jnp.float32, -bound, bound)
    b_ih = jax.random.uniform(keys[4], (3 * rnn_out,), jnp.float32, -bound, bound)
    b_hh = jax.random.uniform(keys[5], (3 * rnn_out,), jnp.float32, -bound, bound)

    # out_layer: xavier_uniform weight, bias filled with 0.01 (matches init_weights).
    xav = math.sqrt(6.0 / (rnn_out + dim_out))
    w_out = jax.random.uniform(keys[6], (dim_out, rnn_out), jnp.float32, -xav, xav)
    b_out = jnp.full((dim_out,), 0.01, jnp.float32)

    out = decode_seq_pallas(hi_data, hidden, w_ih, w_hh, b_ih, b_hh, w_out, b_out)
    out = jax.block_until_ready(out)

    ref = _reference(hi_data, hidden, w_ih, w_hh, b_ih, b_hh, w_out, b_out)
    assert out.shape == (B, S, dim_out)
    assert jnp.allclose(out, ref, atol=1e-4, rtol=1e-4), float(jnp.max(jnp.abs(out - ref)))

    print("KERNEL_OK")
</pallas_src>

<mosaic_0001>
module attributes {stable_mosaic.version = 11 : i64} {
  func.func @_decode_seq_kernel(%arg0: memref<2x8x5xf32, #tpu.memory_space<vmem>>, %arg1: memref<2x128xf32, #tpu.memory_space<vmem>>, %arg2: memref<5x384xf32, #tpu.memory_space<vmem>>, %arg3: memref<128x384xf32, #tpu.memory_space<vmem>>, %arg4: memref<1x384xf32, #tpu.memory_space<vmem>>, %arg5: memref<1x128xf32, #tpu.memory_space<vmem>>, %arg6: memref<128x5xf32, #tpu.memory_space<vmem>>, %arg7: memref<1x5xf32, #tpu.memory_space<vmem>>, %arg8: memref<2x8x5xf32, #tpu.memory_space<vmem>>) attributes {dimension_semantics = [], scalar_prefetch = 0 : i64, scratch_operands = 0 : i64, tpu.core_type = #tpu.core_type<tc>} {
    %c0 = arith.constant 0 : index
    %c0_0 = arith.constant 0 : index
    %c0_1 = arith.constant 0 : index
    %0 = vector.load %arg0[%c0, %c0_0, %c0_1] : memref<2x8x5xf32, #tpu.memory_space<vmem>>, vector<2x8x5xf32>
    %1 = vector.shape_cast %0 : vector<2x8x5xf32> to vector<16x5xf32>
    %c0_2 = arith.constant 0 : index
    %c0_3 = arith.constant 0 : index
    %2 = vector.load %arg2[%c0_2, %c0_3] : memref<5x384xf32, #tpu.memory_space<vmem>>, vector<5x384xf32>
    %cst = arith.constant dense<0.000000e+00> : vector<16x384xf32>
    %3 = tpu.matmul %1, %2, %cst {dimension_numbers = #tpu.dot_dimension_numbers<[1], [0], [0], [1], [0, 0, 1, 1], [], []>} : vector<16x5xf32>, vector<5x384xf32>, vector<16x384xf32> -> vector<16x384xf32>
    %c0_4 = arith.constant 0 : index
    %c0_5 = arith.constant 0 : index
    %4 = vector.load %arg4[%c0_4, %c0_5] : memref<1x384xf32, #tpu.memory_space<vmem>>, vector<1x384xf32>
    %5 = vector.broadcast %4 : vector<1x384xf32> to vector<16x384xf32>
    %6 = arith.addf %3, %5 : vector<16x384xf32>
    %7 = vector.shape_cast %6 : vector<16x384xf32> to vector<2x8x384xf32>
    %8 = vector.extract_strided_slice %7 {offsets = [0, 0, 0], sizes = [2, 1, 384], strides = [1, 1, 1]} : vector<2x8x384xf32> to vector<2x1x384xf32>
    %9 = vector.shape_cast %8 : vector<2x1x384xf32> to vector<2x384xf32>
    %10 = vector.extract_strided_slice %7 {offsets = [0, 1, 0], sizes = [2, 1, 384], strides = [1, 1, 1]} : vector<2x8x384xf32> to vector<2x1x384xf32>
    %11 = vector.shape_cast %10 : vector<2x1x384xf32> to vector<2x384xf32>
    %12 = vector.extract_strided_slice %7 {offsets = [0, 2, 0], sizes = [2, 1, 384], strides = [1, 1, 1]} : vector<2x8x384xf32> to vector<2x1x384xf32>
    %13 = vector.shape_cast %12 : vector<2x1x384xf32> to vector<2x384xf32>
    %14 = vector.extract_strided_slice %7 {offsets = [0, 3, 0], sizes = [2, 1, 384], strides = [1, 1, 1]} : vector<2x8x384xf32> to vector<2x1x384xf32>
    %15 = vector.shape_cast %14 : vector<2x1x384xf32> to vector<2x384xf32>
    %16 = vector.extract_strided_slice %7 {offsets = [0, 4, 0], sizes = [2, 1, 384], strides = [1, 1, 1]} : vector<2x8x384xf32> to vector<2x1x384xf32>
    %17 = vector.shape_cast %16 : vector<2x1x384xf32> to vector<2x384xf32>
    %18 = vector.extract_strided_slice %7 {offsets = [0, 5, 0], sizes = [2, 1, 384], strides = [1, 1, 1]} : vector<2x8x384xf32> to vector<2x1x384xf32>
    %19 = vector.shape_cast %18 : vector<2x1x384xf32> to vector<2x384xf32>
    %20 = vector.extract_strided_slice %7 {offsets = [0, 6, 0], sizes = [2, 1, 384], strides = [1, 1, 1]} : vector<2x8x384xf32> to vector<2x1x384xf32>
    %21 = vector.shape_cast %20 : vector<2x1x384xf32> to vector<2x384xf32>
    %22 = vector.extract_strided_slice %7 {offsets = [0, 7, 0], sizes = [2, 1, 384], strides = [1, 1, 1]} : vector<2x8x384xf32> to vector<2x1x384xf32>
    %23 = vector.shape_cast %22 : vector<2x1x384xf32> to vector<2x384xf32>
    %c0_6 = arith.constant 0 : index
    %c0_7 = arith.constant 0 : index
    %24 = vector.load %arg3[%c0_6, %c0_7] : memref<128x384xf32, #tpu.memory_space<vmem>>, vector<128x384xf32>
    %c0_8 = arith.constant 0 : index
    %c0_9 = arith.constant 0 : index
    %25 = vector.load %arg5[%c0_8, %c0_9] : memref<1x128xf32, #tpu.memory_space<vmem>>, vector<1x128xf32>
    %c0_10 = arith.constant 0 : index
    %c0_11 = arith.constant 0 : index
    %26 = vector.load %arg1[%c0_10, %c0_11] : memref<2x128xf32, #tpu.memory_space<vmem>>, vector<2x128xf32>
    %cst_12 = arith.constant dense<0.000000e+00> : vector<2x384xf32>
    %27 = tpu.matmul %26, %24, %cst_12 {dimension_numbers = #tpu.dot_dimension_numbers<[1], [0], [0], [1], [0, 0, 1, 1], [], []>} : vector<2x128xf32>, vector<128x384xf32>, vector<2x384xf32> -> vector<2x384xf32>
    %28 = vector.extract_strided_slice %9 {offsets = [0, 0], sizes = [2, 128], strides = [1, 1]} : vector<2x384xf32> to vector<2x128xf32>
    %29 = vector.extract_strided_slice %27 {offsets = [0, 0], sizes = [2, 128], strides = [1, 1]} : vector<2x384xf32> to vector<2x128xf32>
    %30 = arith.addf %28, %29 : vector<2x128xf32>
    %cst_13 = arith.constant 5.000000e-01 : f32
    %31 = vector.broadcast %cst_13 : f32 to vector<2x128xf32>
    %32 = arith.mulf %31, %30 : vector<2x128xf32>
    %33 = math.tanh %32 : vector<2x128xf32>
    %cst_14 = arith.constant 5.000000e-01 : f32
    %34 = vector.broadcast %cst_14 : f32 to vector<2x128xf32>
    %35 = arith.mulf %34, %33 : vector<2x128xf32>
    %cst_15 = arith.constant 5.000000e-01 : f32
    %36 = vector.broadcast %cst_15 : f32 to vector<2x128xf32>
    %37 = arith.addf %35, %36 : vector<2x128xf32>
    %38 = vector.extract_strided_slice %9 {offsets = [0, 128], sizes = [2, 128], strides = [1, 1]} : vector<2x384xf32> to vector<2x128xf32>
    %39 = vector.extract_strided_slice %27 {offsets = [0, 128], sizes = [2, 128], strides = [1, 1]} : vector<2x384xf32> to vector<2x128xf32>
    %40 = arith.addf %38, %39 : vector<2x128xf32>
    %cst_16 = arith.constant 5.000000e-01 : f32
    %41 = vector.broadcast %cst_16 : f32 to vector<2x128xf32>
    %42 = arith.mulf %41, %40 : vector<2x128xf32>
    %43 = math.tanh %42 : vector<2x128xf32>
    %cst_17 = arith.constant 5.000000e-01 : f32
    %44 = vector.broadcast %cst_17 : f32 to vector<2x128xf32>
    %45 = arith.mulf %44, %43 : vector<2x128xf32>
    %cst_18 = arith.constant 5.000000e-01 : f32
    %46 = vector.broadcast %cst_18 : f32 to vector<2x128xf32>
    %47 = arith.addf %45, %46 : vector<2x128xf32>
    %48 = vector.extract_strided_slice %9 {offsets = [0, 256], sizes = [2, 128], strides = [1, 1]} : vector<2x384xf32> to vector<2x128xf32>
    %49 = vector.extract_strided_slice %27 {offsets = [0, 256], sizes = [2, 128], strides = [1, 1]} : vector<2x384xf32> to vector<2x128xf32>
    %50 = vector.broadcast %25 : vector<1x128xf32> to vector<2x128xf32>
    %51 = arith.addf %49, %50 : vector<2x128xf32>
    %52 = arith.mulf %37, %51 : vector<2x128xf32>
    %53 = arith.addf %48, %52 : vector<2x128xf32>
    %54 = math.tanh %53 : vector<2x128xf32>
    %cst_19 = arith.constant 1.000000e+00 : f32
    %55 = vector.broadcast %cst_19 : f32 to vector<2x128xf32>
    %56 = arith.subf %55, %47 : vector<2x128xf32>
    %57 = arith.mulf %56, %54 : vector<2x128xf32>
    %58 = arith.mulf %47, %26 : vector<2x128xf32>
    %59 = arith.addf %57, %58 : vector<2x128xf32>
    %cst_20 = arith.constant dense<0.000000e+00> : vector<2x384xf32>
    %60 = tpu.matmul %59, %24, %cst_20 {dimension_numbers = #tpu.dot_dimension_numbers<[1], [0], [0], [1], [0, 0, 1, 1], [], []>} : vector<2x128xf32>, vector<128x384xf32>, vector<2x384xf32> -> vector<2x384xf32>
    %61 = vector.extract_strided_slice %11 {offsets = [0, 0], sizes = [2, 128], strides = [1, 1]} : vector<2x384xf32> to vector<2x128xf32>
    %62 = vector.extract_strided_slice %60 {offsets = [0, 0], sizes = [2, 128], strides = [1, 1]} : vector<2x384xf32> to vector<2x128xf32>
    %63 = arith.addf %61, %62 : vector<2x128xf32>
    %cst_21 = arith.constant 5.000000e-01 : f32
    %64 = vector.broadcast %cst_21 : f32 to vector<2x128xf32>
    %65 = arith.mulf %64, %63 : vector<2x128xf32>
    %66 = math.tanh %65 : vector<2x128xf32>
    %cst_22 = arith.constant 5.000000e-01 : f32
    %67 = vector.broadcast %cst_22 : f32 to vector<2x128xf32>
    %68 = arith.mulf %67, %66 : vector<2x128xf32>
    %cst_23 = arith.constant 5.000000e-01 : f32
    %69 = vector.broadcast %cst_23 : f32 to vector<2x128xf32>
    %70 = arith.addf %68, %69 : vector<2x128xf32>
    %71 = vector.extract_strided_slice %11 {offsets = [0, 128], sizes = [2, 128], strides = [1, 1]} : vector<2x384xf32> to vector<2x128xf32>
    %72 = vector.extract_strided_slice %60 {offsets = [0, 128], sizes = [2, 128], strides = [1, 1]} : vector<2x384xf32> to vector<2x128xf32>
    %73 = arith.addf %71, %72 : vector<2x128xf32>
    %cst_24 = arith.constant 5.000000e-01 : f32
    %74 = vector.broadcast %cst_24 : f32 to vector<2x128xf32>
    %75 = arith.mulf %74, %73 : vector<2x128xf32>
    %76 = math.tanh %75 : vector<2x128xf32>
    %cst_25 = arith.constant 5.000000e-01 : f32
    %77 = vector.broadcast %cst_25 : f32 to vector<2x128xf32>
    %78 = arith.mulf %77, %76 : vector<2x128xf32>
    %cst_26 = arith.constant 5.000000e-01 : f32
    %79 = vector.broadcast %cst_26 : f32 to vector<2x128xf32>
    %80 = arith.addf %78, %79 : vector<2x128xf32>
    %81 = vector.extract_strided_slice %11 {offsets = [0, 256], sizes = [2, 128], strides = [1, 1]} : vector<2x384xf32> to vector<2x128xf32>
    %82 = vector.extract_strided_slice %60 {offsets = [0, 256], sizes = [2, 128], strides = [1, 1]} : vector<2x384xf32> to vector<2x128xf32>
    %83 = vector.broadcast %25 : vector<1x128xf32> to vector<2x128xf32>
    %84 = arith.addf %82, %83 : vector<2x128xf32>
    %85 = arith.mulf %70, %84 : vector<2x128xf32>
    %86 = arith.addf %81, %85 : vector<2x128xf32>
    %87 = math.tanh %86 : vector<2x128xf32>
    %cst_27 = arith.constant 1.000000e+00 : f32
    %88 = vector.broadcast %cst_27 : f32 to vector<2x128xf32>
    %89 = arith.subf %88, %80 : vector<2x128xf32>
    %90 = arith.mulf %89, %87 : vector<2x128xf32>
    %91 = arith.mulf %80, %59 : vector<2x128xf32>
    %92 = arith.addf %90, %91 : vector<2x128xf32>
    %cst_28 = arith.constant dense<0.000000e+00> : vector<2x384xf32>
    %93 = tpu.matmul %92, %24, %cst_28 {dimension_numbers = #tpu.dot_dimension_numbers<[1], [0], [0], [1], [0, 0, 1, 1], [], []>} : vector<2x128xf32>, vector<128x384xf32>, vector<2x384xf32> -> vector<2x384xf32>
    %94 = vector.extract_strided_slice %13 {offsets = [0, 0], sizes = [2, 128], strides = [1, 1]} : vector<2x384xf32> to vector<2x128xf32>
    %95 = vector.extract_strided_slice %93 {offsets = [0, 0], sizes = [2, 128], strides = [1, 1]} : vector<2x384xf32> to vector<2x128xf32>
    %96 = arith.addf %94, %95 : vector<2x128xf32>
    %cst_29 = arith.constant 5.000000e-01 : f32
    %97 = vector.broadcast %cst_29 : f32 to vector<2x128xf32>
    %98 = arith.mulf %97, %96 : vector<2x128xf32>
    %99 = math.tanh %98 : vector<2x128xf32>
    %cst_30 = arith.constant 5.000000e-01 : f32
    %100 = vector.broadcast %cst_30 : f32 to vector<2x128xf32>
    %101 = arith.mulf %100, %99 : vector<2x128xf32>
    %cst_31 = arith.constant 5.000000e-01 : f32
    %102 = vector.broadcast %cst_31 : f32 to vector<2x128xf32>
    %103 = arith.addf %101, %102 : vector<2x128xf32>
    %104 = vector.extract_strided_slice %13 {offsets = [0, 128], sizes = [2, 128], strides = [1, 1]} : vector<2x384xf32> to vector<2x128xf32>
    %105 = vector.extract_strided_slice %93 {offsets = [0, 128], sizes = [2, 128], strides = [1, 1]} : vector<2x384xf32> to vector<2x128xf32>
    %106 = arith.addf %104, %105 : vector<2x128xf32>
    %cst_32 = arith.constant 5.000000e-01 : f32
    %107 = vector.broadcast %cst_32 : f32 to vector<2x128xf32>
    %108 = arith.mulf %107, %106 : vector<2x128xf32>
    %109 = math.tanh %108 : vector<2x128xf32>
    %cst_33 = arith.constant 5.000000e-01 : f32
    %110 = vector.broadcast %cst_33 : f32 to vector<2x128xf32>
    %111 = arith.mulf %110, %109 : vector<2x128xf32>
    %cst_34 = arith.constant 5.000000e-01 : f32
    %112 = vector.broadcast %cst_34 : f32 to vector<2x128xf32>
    %113 = arith.addf %111, %112 : vector<2x128xf32>
    %114 = vector.extract_strided_slice %13 {offsets = [0, 256], sizes = [2, 128], strides = [1, 1]} : vector<2x384xf32> to vector<2x128xf32>
    %115 = vector.extract_strided_slice %93 {offsets = [0, 256], sizes = [2, 128], strides = [1, 1]} : vector<2x384xf32> to vector<2x128xf32>
    %116 = vector.broadcast %25 : vector<1x128xf32> to vector<2x128xf32>
    %117 = arith.addf %115, %116 : vector<2x128xf32>
    %118 = arith.mulf %103, %117 : vector<2x128xf32>
    %119 = arith.addf %114, %118 : vector<2x128xf32>
    %120 = math.tanh %119 : vector<2x128xf32>
    %cst_35 = arith.constant 1.000000e+00 : f32
    %121 = vector.broadcast %cst_35 : f32 to vector<2x128xf32>
    %122 = arith.subf %121, %113 : vector<2x128xf32>
    %123 = arith.mulf %122, %120 : vector<2x128xf32>
    %124 = arith.mulf %113, %92 : vector<2x128xf32>
    %125 = arith.addf %123, %124 : vector<2x128xf32>
    %cst_36 = arith.constant dense<0.000000e+00> : vector<2x384xf32>
    %126 = tpu.matmul %125, %24, %cst_36 {dimension_numbers = #tpu.dot_dimension_numbers<[1], [0], [0], [1], [0, 0, 1, 1], [], []>} : vector<2x128xf32>, vector<128x384xf32>, vector<2x384xf32> -> vector<2x384xf32>
    %127 = vector.extract_strided_slice %15 {offsets = [0, 0], sizes = [2, 128], strides = [1, 1]} : vector<2x384xf32> to vector<2x128xf32>
    %128 = vector.extract_strided_slice %126 {offsets = [0, 0], sizes = [2, 128], strides = [1, 1]} : vector<2x384xf32> to vector<2x128xf32>
    %129 = arith.addf %127, %128 : vector<2x128xf32>
    %cst_37 = arith.constant 5.000000e-01 : f32
    %130 = vector.broadcast %cst_37 : f32 to vector<2x128xf32>
    %131 = arith.mulf %130, %129 : vector<2x128xf32>
    %132 = math.tanh %131 : vector<2x128xf32>
    %cst_38 = arith.constant 5.000000e-01 : f32
    %133 = vector.broadcast %cst_38 : f32 to vector<2x128xf32>
    %134 = arith.mulf %133, %132 : vector<2x128xf32>
    %cst_39 = arith.constant 5.000000e-01 : f32
    %135 = vector.broadcast %cst_39 : f32 to vector<2x128xf32>
    %136 = arith.addf %134, %135 : vector<2x128xf32>
    %137 = vector.extract_strided_slice %15 {offsets = [0, 128], sizes = [2, 128], strides = [1, 1]} : vector<2x384xf32> to vector<2x128xf32>
    %138 = vector.extract_strided_slice %126 {offsets = [0, 128], sizes = [2, 128], strides = [1, 1]} : vector<2x384xf32> to vector<2x128xf32>
    %139 = arith.addf %137, %138 : vector<2x128xf32>
    %cst_40 = arith.constant 5.000000e-01 : f32
    %140 = vector.broadcast %cst_40 : f32 to vector<2x128xf32>
    %141 = arith.mulf %140, %139 : vector<2x128xf32>
    %142 = math.tanh %141 : vector<2x128xf32>
    %cst_41 = arith.constant 5.000000e-01 : f32
    %143 = vector.broadcast %cst_41 : f32 to vector<2x128xf32>
    %144 = arith.mulf %143, %142 : vector<2x128xf32>
    %cst_42 = arith.constant 5.000000e-01 : f32
    %145 = vector.broadcast %cst_42 : f32 to vector<2x128xf32>
    %146 = arith.addf %144, %145 : vector<2x128xf32>
    %147 = vector.extract_strided_slice %15 {offsets = [0, 256], sizes = [2, 128], strides = [1, 1]} : vector<2x384xf32> to vector<2x128xf32>
    %148 = vector.extract_strided_slice %126 {offsets = [0, 256], sizes = [2, 128], strides = [1, 1]} : vector<2x384xf32> to vector<2x128xf32>
    %149 = vector.broadcast %25 : vector<1x128xf32> to vector<2x128xf32>
    %150 = arith.addf %148, %149 : vector<2x128xf32>
    %151 = arith.mulf %136, %150 : vector<2x128xf32>
    %152 = arith.addf %147, %151 : vector<2x128xf32>
    %153 = math.tanh %152 : vector<2x128xf32>
    %cst_43 = arith.constant 1.000000e+00 : f32
    %154 = vector.broadcast %cst_43 : f32 to vector<2x128xf32>
    %155 = arith.subf %154, %146 : vector<2x128xf32>
    %156 = arith.mulf %155, %153 : vector<2x128xf32>
    %157 = arith.mulf %146, %125 : vector<2x128xf32>
    %158 = arith.addf %156, %157 : vector<2x128xf32>
    %cst_44 = arith.constant dense<0.000000e+00> : vector<2x384xf32>
    %159 = tpu.matmul %158, %24, %cst_44 {dimension_numbers = #tpu.dot_dimension_numbers<[1], [0], [0], [1], [0, 0, 1, 1], [], []>} : vector<2x128xf32>, vector<128x384xf32>, vector<2x384xf32> -> vector<2x384xf32>
    %160 = vector.extract_strided_slice %17 {offsets = [0, 0], sizes = [2, 128], strides = [1, 1]} : vector<2x384xf32> to vector<2x128xf32>
    %161 = vector.extract_strided_slice %159 {offsets = [0, 0], sizes = [2, 128], strides = [1, 1]} : vector<2x384xf32> to vector<2x128xf32>
    %162 = arith.addf %160, %161 : vector<2x128xf32>
    %cst_45 = arith.constant 5.000000e-01 : f32
    %163 = vector.broadcast %cst_45 : f32 to vector<2x128xf32>
    %164 = arith.mulf %163, %162 : vector<2x128xf32>
    %165 = math.tanh %164 : vector<2x128xf32>
    %cst_46 = arith.constant 5.000000e-01 : f32
    %166 = vector.broadcast %cst_46 : f32 to vector<2x128xf32>
    %167 = arith.mulf %166, %165 : vector<2x128xf32>
    %cst_47 = arith.constant 5.000000e-01 : f32
    %168 = vector.broadcast %cst_47 : f32 to vector<2x128xf32>
    %169 = arith.addf %167, %168 : vector<2x128xf32>
    %170 = vector.extract_strided_slice %17 {offsets = [0, 128], sizes = [2, 128], strides = [1, 1]} : vector<2x384xf32> to vector<2x128xf32>
    %171 = vector.extract_strided_slice %159 {offsets = [0, 128], sizes = [2, 128], strides = [1, 1]} : vector<2x384xf32> to vector<2x128xf32>
    %172 = arith.addf %170, %171 : vector<2x128xf32>
    %cst_48 = arith.constant 5.000000e-01 : f32
    %173 = vector.broadcast %cst_48 : f32 to vector<2x128xf32>
    %174 = arith.mulf %173, %172 : vector<2x128xf32>
    %175 = math.tanh %174 : vector<2x128xf32>
    %cst_49 = arith.constant 5.000000e-01 : f32
    %176 = vector.broadcast %cst_49 : f32 to vector<2x128xf32>
    %177 = arith.mulf %176, %175 : vector<2x128xf32>
    %cst_50 = arith.constant 5.000000e-01 : f32
    %178 = vector.broadcast %cst_50 : f32 to vector<2x128xf32>
    %179 = arith.addf %177, %178 : vector<2x128xf32>
    %180 = vector.extract_strided_slice %17 {offsets = [0, 256], sizes = [2, 128], strides = [1, 1]} : vector<2x384xf32> to vector<2x128xf32>
    %181 = vector.extract_strided_slice %159 {offsets = [0, 256], sizes = [2, 128], strides = [1, 1]} : vector<2x384xf32> to vector<2x128xf32>
    %182 = vector.broadcast %25 : vector<1x128xf32> to vector<2x128xf32>
    %183 = arith.addf %181, %182 : vector<2x128xf32>
    %184 = arith.mulf %169, %183 : vector<2x128xf32>
    %185 = arith.addf %180, %184 : vector<2x128xf32>
    %186 = math.tanh %185 : vector<2x128xf32>
    %cst_51 = arith.constant 1.000000e+00 : f32
    %187 = vector.broadcast %cst_51 : f32 to vector<2x128xf32>
    %188 = arith.subf %187, %179 : vector<2x128xf32>
    %189 = arith.mulf %188, %186 : vector<2x128xf32>
    %190 = arith.mulf %179, %158 : vector<2x128xf32>
    %191 = arith.addf %189, %190 : vector<2x128xf32>
    %cst_52 = arith.constant dense<0.000000e+00> : vector<2x384xf32>
    %192 = tpu.matmul %191, %24, %cst_52 {dimension_numbers = #tpu.dot_dimension_numbers<[1], [0], [0], [1], [0, 0, 1, 1], [], []>} : vector<2x128xf32>, vector<128x384xf32>, vector<2x384xf32> -> vector<2x384xf32>
    %193 = vector.extract_strided_slice %19 {offsets = [0, 0], sizes = [2, 128], strides = [1, 1]} : vector<2x384xf32> to vector<2x128xf32>
    %194 = vector.extract_strided_slice %192 {offsets = [0, 0], sizes = [2, 128], strides = [1, 1]} : vector<2x384xf32> to vector<2x128xf32>
    %195 = arith.addf %193, %194 : vector<2x128xf32>
    %cst_53 = arith.constant 5.000000e-01 : f32
    %196 = vector.broadcast %cst_53 : f32 to vector<2x128xf32>
    %197 = arith.mulf %196, %195 : vector<2x128xf32>
    %198 = math.tanh %197 : vector<2x128xf32>
    %cst_54 = arith.constant 5.000000e-01 : f32
    %199 = vector.broadcast %cst_54 : f32 to vector<2x128xf32>
    %200 = arith.mulf %199, %198 : vector<2x128xf32>
    %cst_55 = arith.constant 5.000000e-01 : f32
    %201 = vector.broadcast %cst_55 : f32 to vector<2x128xf32>
    %202 = arith.addf %200, %201 : vector<2x128xf32>
    %203 = vector.extract_strided_slice %19 {offsets = [0, 128], sizes = [2, 128], strides = [1, 1]} : vector<2x384xf32> to vector<2x128xf32>
    %204 = vector.extract_strided_slice %192 {offsets = [0, 128], sizes = [2, 128], strides = [1, 1]} : vector<2x384xf32> to vector<2x128xf32>
    %205 = arith.addf %203, %204 : vector<2x128xf32>
    %cst_56 = arith.constant 5.000000e-01 : f32
    %206 = vector.broadcast %cst_56 : f32 to vector<2x128xf32>
    %207 = arith.mulf %206, %205 : vector<2x128xf32>
    %208 = math.tanh %207 : vector<2x128xf32>
    %cst_57 = arith.constant 5.000000e-01 : f32
    %209 = vector.broadcast %cst_57 : f32 to vector<2x128xf32>
    %210 = arith.mulf %209, %208 : vector<2x128xf32>
    %cst_58 = arith.constant 5.000000e-01 : f32
    %211 = vector.broadcast %cst_58 : f32 to vector<2x128xf32>
    %212 = arith.addf %210, %211 : vector<2x128xf32>
    %213 = vector.extract_strided_slice %19 {offsets = [0, 256], sizes = [2, 128], strides = [1, 1]} : vector<2x384xf32> to vector<2x128xf32>
    %214 = vector.extract_strided_slice %192 {offsets = [0, 256], sizes = [2, 128], strides = [1, 1]} : vector<2x384xf32> to vector<2x128xf32>
    %215 = vector.broadcast %25 : vector<1x128xf32> to vector<2x128xf32>
    %216 = arith.addf %214, %215 : vector<2x128xf32>
    %217 = arith.mulf %202, %216 : vector<2x128xf32>
    %218 = arith.addf %213, %217 : vector<2x128xf32>
    %219 = math.tanh %218 : vector<2x128xf32>
    %cst_59 = arith.constant 1.000000e+00 : f32
    %220 = vector.broadcast %cst_59 : f32 to vector<2x128xf32>
    %221 = arith.subf %220, %212 : vector<2x128xf32>
    %222 = arith.mulf %221, %219 : vector<2x128xf32>
    %223 = arith.mulf %212, %191 : vector<2x128xf32>
    %224 = arith.addf %222, %223 : vector<2x128xf32>
    %cst_60 = arith.constant dense<0.000000e+00> : vector<2x384xf32>
    %225 = tpu.matmul %224, %24, %cst_60 {dimension_numbers = #tpu.dot_dimension_numbers<[1], [0], [0], [1], [0, 0, 1, 1], [], []>} : vector<2x128xf32>, vector<128x384xf32>, vector<2x384xf32> -> vector<2x384xf32>
    %226 = vector.extract_strided_slice %21 {offsets = [0, 0], sizes = [2, 128], strides = [1, 1]} : vector<2x384xf32> to vector<2x128xf32>
    %227 = vector.extract_strided_slice %225 {offsets = [0, 0], sizes = [2, 128], strides = [1, 1]} : vector<2x384xf32> to vector<2x128xf32>
    %228 = arith.addf %226, %227 : vector<2x128xf32>
    %cst_61 = arith.constant 5.000000e-01 : f32
    %229 = vector.broadcast %cst_61 : f32 to vector<2x128xf32>
    %230 = arith.mulf %229, %228 : vector<2x128xf32>
    %231 = math.tanh %230 : vector<2x128xf32>
    %cst_62 = arith.constant 5.000000e-01 : f32
    %232 = vector.broadcast %cst_62 : f32 to vector<2x128xf32>
    %233 = arith.mulf %232, %231 : vector<2x128xf32>
    %cst_63 = arith.constant 5.000000e-01 : f32
    %234 = vector.broadcast %cst_63 : f32 to vector<2x128xf32>
    %235 = arith.addf %233, %234 : vector<2x128xf32>
    %236 = vector.extract_strided_slice %21 {offsets = [0, 128], sizes = [2, 128], strides = [1, 1]} : vector<2x384xf32> to vector<2x128xf32>
    %237 = vector.extract_strided_slice %225 {offsets = [0, 128], sizes = [2, 128], strides = [1, 1]} : vector<2x384xf32> to vector<2x128xf32>
    %238 = arith.addf %236, %237 : vector<2x128xf32>
    %cst_64 = arith.constant 5.000000e-01 : f32
    %239 = vector.broadcast %cst_64 : f32 to vector<2x128xf32>
    %240 = arith.mulf %239, %238 : vector<2x128xf32>
    %241 = math.tanh %240 : vector<2x128xf32>
    %cst_65 = arith.constant 5.000000e-01 : f32
    %242 = vector.broadcast %cst_65 : f32 to vector<2x128xf32>
    %243 = arith.mulf %242, %241 : vector<2x128xf32>
    %cst_66 = arith.constant 5.000000e-01 : f32
    %244 = vector.broadcast %cst_66 : f32 to vector<2x128xf32>
    %245 = arith.addf %243, %244 : vector<2x128xf32>
    %246 = vector.extract_strided_slice %21 {offsets = [0, 256], sizes = [2, 128], strides = [1, 1]} : vector<2x384xf32> to vector<2x128xf32>
    %247 = vector.extract_strided_slice %225 {offsets = [0, 256], sizes = [2, 128], strides = [1, 1]} : vector<2x384xf32> to vector<2x128xf32>
    %248 = vector.broadcast %25 : vector<1x128xf32> to vector<2x128xf32>
    %249 = arith.addf %247, %248 : vector<2x128xf32>
    %250 = arith.mulf %235, %249 : vector<2x128xf32>
    %251 = arith.addf %246, %250 : vector<2x128xf32>
    %252 = math.tanh %251 : vector<2x128xf32>
    %cst_67 = arith.constant 1.000000e+00 : f32
    %253 = vector.broadcast %cst_67 : f32 to vector<2x128xf32>
    %254 = arith.subf %253, %245 : vector<2x128xf32>
    %255 = arith.mulf %254, %252 : vector<2x128xf32>
    %256 = arith.mulf %245, %224 : vector<2x128xf32>
    %257 = arith.addf %255, %256 : vector<2x128xf32>
    %cst_68 = arith.constant dense<0.000000e+00> : vector<2x384xf32>
    %258 = tpu.matmul %257, %24, %cst_68 {dimension_numbers = #tpu.dot_dimension_numbers<[1], [0], [0], [1], [0, 0, 1, 1], [], []>} : vector<2x128xf32>, vector<128x384xf32>, vector<2x384xf32> -> vector<2x384xf32>
    %259 = vector.extract_strided_slice %23 {offsets = [0, 0], sizes = [2, 128], strides = [1, 1]} : vector<2x384xf32> to vector<2x128xf32>
    %260 = vector.extract_strided_slice %258 {offsets = [0, 0], sizes = [2, 128], strides = [1, 1]} : vector<2x384xf32> to vector<2x128xf32>
    %261 = arith.addf %259, %260 : vector<2x128xf32>
    %cst_69 = arith.constant 5.000000e-01 : f32
    %262 = vector.broadcast %cst_69 : f32 to vector<2x128xf32>
    %263 = arith.mulf %262, %261 : vector<2x128xf32>
    %264 = math.tanh %263 : vector<2x128xf32>
    %cst_70 = arith.constant 5.000000e-01 : f32
    %265 = vector.broadcast %cst_70 : f32 to vector<2x128xf32>
    %266 = arith.mulf %265, %264 : vector<2x128xf32>
    %cst_71 = arith.constant 5.000000e-01 : f32
    %267 = vector.broadcast %cst_71 : f32 to vector<2x128xf32>
    %268 = arith.addf %266, %267 : vector<2x128xf32>
    %269 = vector.extract_strided_slice %23 {offsets = [0, 128], sizes = [2, 128], strides = [1, 1]} : vector<2x384xf32> to vector<2x128xf32>
    %270 = vector.extract_strided_slice %258 {offsets = [0, 128], sizes = [2, 128], strides = [1, 1]} : vector<2x384xf32> to vector<2x128xf32>
    %271 = arith.addf %269, %270 : vector<2x128xf32>
    %cst_72 = arith.constant 5.000000e-01 : f32
    %272 = vector.broadcast %cst_72 : f32 to vector<2x128xf32>
    %273 = arith.mulf %272, %271 : vector<2x128xf32>
    %274 = math.tanh %273 : vector<2x128xf32>
    %cst_73 = arith.constant 5.000000e-01 : f32
    %275 = vector.broadcast %cst_73 : f32 to vector<2x128xf32>
    %276 = arith.mulf %275, %274 : vector<2x128xf32>
    %cst_74 = arith.constant 5.000000e-01 : f32
    %277 = vector.broadcast %cst_74 : f32 to vector<2x128xf32>
    %278 = arith.addf %276, %277 : vector<2x128xf32>
    %279 = vector.extract_strided_slice %23 {offsets = [0, 256], sizes = [2, 128], strides = [1, 1]} : vector<2x384xf32> to vector<2x128xf32>
    %280 = vector.extract_strided_slice %258 {offsets = [0, 256], sizes = [2, 128], strides = [1, 1]} : vector<2x384xf32> to vector<2x128xf32>
    %281 = vector.broadcast %25 : vector<1x128xf32> to vector<2x128xf32>
    %282 = arith.addf %280, %281 : vector<2x128xf32>
    %283 = arith.mulf %268, %282 : vector<2x128xf32>
    %284 = arith.addf %279, %283 : vector<2x128xf32>
    %285 = math.tanh %284 : vector<2x128xf32>
    %cst_75 = arith.constant 1.000000e+00 : f32
    %286 = vector.broadcast %cst_75 : f32 to vector<2x128xf32>
    %287 = arith.subf %286, %278 : vector<2x128xf32>
    %288 = arith.mulf %287, %285 : vector<2x128xf32>
    %289 = arith.mulf %278, %257 : vector<2x128xf32>
    %290 = arith.addf %288, %289 : vector<2x128xf32>
    %291 = vector.shape_cast %59 : vector<2x128xf32> to vector<2x1x128xf32>
    %292 = vector.shape_cast %92 : vector<2x128xf32> to vector<2x1x128xf32>
    %293 = vector.shape_cast %125 : vector<2x128xf32> to vector<2x1x128xf32>
    %294 = vector.shape_cast %158 : vector<2x128xf32> to vector<2x1x128xf32>
    %295 = vector.shape_cast %191 : vector<2x128xf32> to vector<2x1x128xf32>
    %296 = vector.shape_cast %224 : vector<2x128xf32> to vector<2x1x128xf32>
    %297 = vector.shape_cast %257 : vector<2x128xf32> to vector<2x1x128xf32>
    %298 = vector.shape_cast %290 : vector<2x128xf32> to vector<2x1x128xf32>
    %299 = tpu.concatenate %291, %292, %293, %294, %295, %296, %297, %298 in 1 : vector<2x1x128xf32>, vector<2x1x128xf32>, vector<2x1x128xf32>, vector<2x1x128xf32>, vector<2x1x128xf32>, vector<2x1x128xf32>, vector<2x1x128xf32>, vector<2x1x128xf32> -> vector<2x8x128xf32>
    %300 = vector.shape_cast %299 : vector<2x8x128xf32> to vector<16x128xf32>
    %c0_76 = arith.constant 0 : index
    %c0_77 = arith.constant 0 : index
    %301 = vector.load %arg6[%c0_76, %c0_77] : memref<128x5xf32, #tpu.memory_space<vmem>>, vector<128x5xf32>
    %cst_78 = arith.constant dense<0.000000e+00> : vector<16x5xf32>
    %302 = tpu.matmul %300, %301, %cst_78 {dimension_numbers = #tpu.dot_dimension_numbers<[1], [0], [0], [1], [0, 0, 1, 1], [], []>} : vector<16x128xf32>, vector<128x5xf32>, vector<16x5xf32> -> vector<16x5xf32>
    %c0_79 = arith.constant 0 : index
    %c0_80 = arith.constant 0 : index
    %303 = vector.load %arg7[%c0_79, %c0_80] : memref<1x5xf32, #tpu.memory_space<vmem>>, vector<1x5xf32>
    %304 = vector.broadcast %303 : vector<1x5xf32> to vector<16x5xf32>
    %305 = arith.addf %302, %304 : vector<16x5xf32>
    %306 = math.tanh %305 : vector<16x5xf32>
    %307 = vector.shape_cast %306 : vector<16x5xf32> to vector<2x8x5xf32>
    %c0_81 = arith.constant 0 : index
    %c0_82 = arith.constant 0 : index
    %c0_83 = arith.constant 0 : index
    %308 = vector.load %arg8[%c0_81, %c0_82, %c0_83] : memref<2x8x5xf32, #tpu.memory_space<vmem>>, vector<2x8x5xf32>
    tpu.vector_store %arg8[%c0_81, %c0_82, %c0_83], %307 {strides = array<i32>} : memref<2x8x5xf32, #tpu.memory_space<vmem>>, vector<2x8x5xf32>,
    return
  }
}

</mosaic_0001>

<llo_original>
// kernel: tpu_custom_call.1
$region0: #{tpu_custom_call.1}
  #allocation0 [shape = 'u32[]', space=smem, size = 0x4, offset = 0x4, fixed_abs, tag = 'smem constant byte address 0x4 - core index']
  #allocation1 [shape = 'u32[144,128]{1,0:T(1,128)}', space=vmem, size = 0x12000, scoped, tag = 'internal scratch']
  %s0 = inlined_call_operand.vmem [shape: f32[2,8,5], index: 0, kind: input, shape index: {}]
  %s1 = inlined_call_operand.vmem [shape: f32[2,128], index: 1, kind: input, shape index: {}]
  %s2 = inlined_call_operand.vmem [shape: f32[5,384], index: 2, kind: input, shape index: {}]
  %s3 = inlined_call_operand.hbm [shape: f32[128,384], index: 3, kind: input, shape index: {}]
  %s4 = inlined_call_operand.vmem [shape: f32[1,384], index: 4, kind: input, shape index: {}]
  %s5 = inlined_call_operand.vmem [shape: f32[1,128], index: 5, kind: input, shape index: {}]
  %s6 = inlined_call_operand.vmem [shape: f32[128,5], index: 6, kind: input, shape index: {}]
  %s7 = inlined_call_operand.vmem [shape: f32[1,5], index: 7, kind: input, shape index: {}]
  %s8 = inlined_call_operand.vmem [shape: f32[2,8,5], index: 8, kind: output, shape index: {}]
  %s9 = sld [smem:[#allocation0]]
  $region46: #{tpu_custom_call.1} parent=0
    _
  %s11 = ssub.s32 1, %s9
  %s12 = scalar_select 0, %s11, %s9
  $region1: #{tpu_custom_call.1} parent=0
    #allocation2 [shape = 'u8[196608]{0}', space=vmem, size = 0x30000, scoped, tag = 'input window, operand 3, single buffered']
    #allocation3 [shape = 's32[1]{0}', space=sflag, size = 0x4, scoped, tag = 'scoped memory for tpu_custom_call.1']
    %13 = vsyncpa [#allocation3], 0
    // Predicated region
    $region2: #{tpu_custom_call.1} parent=1 // pred_check
      _
    $region3: #{tpu_custom_call.1} parent=1 // pred_check_branch
      %15 = sbr.rel (0) target = $region5
    $region4: #{tpu_custom_call.1} parent=1 // pred_region
      _
    $region5: #{tpu_custom_call.1} parent=1 // pred_fallthru
      _
    // Predicated region
    $region6: #{tpu_custom_call.1} parent=1 // pred_check
      _
    $region7: #{tpu_custom_call.1} parent=1 // pred_check_branch
      %17 = sbr.rel (0) target = $region9
    $region8: #{tpu_custom_call.1} parent=1 // pred_region
      _
    $region9: #{tpu_custom_call.1} parent=1 // pred_fallthru
      _
    // Predicated region
    $region10: #{tpu_custom_call.1} parent=1 // pred_check
      _
    $region11: #{tpu_custom_call.1} parent=1 // pred_check_branch
      %19 = sbr.rel (0) target = $region13
    $region12: #{tpu_custom_call.1} parent=1 // pred_region
      _
    $region13: #{tpu_custom_call.1} parent=1 // pred_fallthru
      _
    // Predicated region
    $region14: #{tpu_custom_call.1} parent=1 // pred_check
      _
    $region15: #{tpu_custom_call.1} parent=1 // pred_check_branch
      %21 = sbr.rel (0) target = $region17
    $region16: #{tpu_custom_call.1} parent=1 // pred_region
      %s23 = ssub.s32 6144, 6144
      %24 = vsyncadd [#allocation3], %s23
      %s25 = sshll.u32 [#allocation2], 4
      %s26 = int_to_ptr.vmem [resolvable:$true] %s25
      %31 = dma.hbm_to_vmem [thread:$0]  %s3, 6144, %s26, [#allocation3], 384, 384, 24
    $region17: #{tpu_custom_call.1} parent=1 // pred_fallthru
      _
    // Predicated region
    $region18: #{tpu_custom_call.1} parent=1 // pred_check
      _
    $region19: #{tpu_custom_call.1} parent=1 // pred_check_branch
      %33 = sbr.rel (0) target = $region21
    $region20: #{tpu_custom_call.1} parent=1 // pred_region
      _
    $region21: #{tpu_custom_call.1} parent=1 // pred_fallthru
      _
    // Predicated region
    $region22: #{tpu_custom_call.1} parent=1 // pred_check
      _
    $region23: #{tpu_custom_call.1} parent=1 // pred_check_branch
      %35 = sbr.rel (0) target = $region25
    $region24: #{tpu_custom_call.1} parent=1 // pred_region
      _
    $region25: #{tpu_custom_call.1} parent=1 // pred_fallthru
      _
    // Predicated region
    $region26: #{tpu_custom_call.1} parent=1 // pred_check
      _
    $region27: #{tpu_custom_call.1} parent=1 // pred_check_branch
      %37 = sbr.rel (0) target = $region29
    $region28: #{tpu_custom_call.1} parent=1 // pred_region
      _
    $region29: #{tpu_custom_call.1} parent=1 // pred_fallthru
      _
    // Predicated region
    $region30: #{tpu_custom_call.1} parent=1 // pred_check
      _
    $region31: #{tpu_custom_call.1} parent=1 // pred_check_branch
      %39 = sbr.rel (0) target = $region33
    $region32: #{tpu_custom_call.1} parent=1 // pred_region
      _
    $region33: #{tpu_custom_call.1} parent=1 // pred_fallthru
      _
    // Predicated region
    $region34: #{tpu_custom_call.1} parent=1 // pred_check
      _
    $region35: #{tpu_custom_call.1} parent=1 // pred_check_branch
      %41 = sbr.rel (0) target = $region37
    $region36: #{tpu_custom_call.1} parent=1 // pred_region
      %42 = dma.done [#allocation3], 6144
    $region37: #{tpu_custom_call.1} parent=1 // pred_fallthru
      _
    %v43 = vld [vmem:[%s0] sm:$0xff]
    %v44 = vld [vmem:[%s0 + $0x8] sm:$0xff]
    %v45 = vld [vmem:[%s2] sm:$0x1f]
    %v46 = vld [vmem:[%s2 + $0x8] sm:$0x1f]
    %v47 = vld [vmem:[%s2 + $0x10] sm:$0x1f]
    %v48 = vld [vmem:[%s4] sm:$0x7]
    %v50 = vlaneseq
    %v51 = vshrl.u32 %v50, 7
    %v52 = vsub.s32 0, %v51
    %v53 = vrot.slane %v48, %v52
    %v54 = vlaneseq
    %v55 = vshrl.u32 %v54, 7
    %v56 = vsub.s32 1, %v55
    %v57 = vrot.slane %v48, %v56
    %v58 = vlaneseq
    %v59 = vshrl.u32 %v58, 7
    %v60 = vsub.s32 2, %v59
    %v61 = vrot.slane %v48, %v60
    %vm65 = vcmask 39936
    %v67 = vsel %vm65, %v43, 0
    %v70 = vsel %vm65, %v44, 0
    %vm72 = vcmask 1044480
    %v74 = vsel %vm72, %v45, 0
    %v77 = vsel %vm72, %v46, 0
    %v80 = vsel %vm72, %v47, 0
    %82 = vmatprep.subr.mxu0 %v77
    %83 = vmatpush1.msra.mxu0 %v74
    %84 = vmatprep.subr.mxu0 0.0
    %85 = vmatpush1.msra.mxu0 0.0
    %86 = vmatprep.subr.mxu0 0.0
    %87 = vmatpush1.msra.mxu0 0.0
    %88 = vmatprep.subr.mxu0 0.0
    %89 = vmatpush1.msra.mxu0 0.0
    %90 = vmatprep.subr.mxu0 0.0
    %91 = vmatpush1.msra.mxu0 0.0
    %92 = vmatprep.subr.mxu0 0.0
    %93 = vmatpush1.msra.mxu0 0.0
    %94 = vmatprep.subr.mxu0 0.0
    %95 = vmatpush1.msra.mxu0 0.0
    %96 = vmatprep.subr.mxu0 0.0
    %97 = vmatpush1.msra.mxu0 0.0
    %98 = vmatprep.subr.mxu0 0.0
    %99 = vmatpush1.msra.mxu0 0.0
    %100 = vmatprep.subr.mxu0 0.0
    %101 = vmatpush1.msra.mxu0 0.0
    %102 = vmatprep.subr.mxu0 0.0
    %103 = vmatpush1.msra.mxu0 0.0
    %104 = vmatprep.subr.mxu0 0.0
    %105 = vmatpush1.msra.mxu0 0.0
    %106 = vmatprep.subr.mxu0 0.0
    %107 = vmatpush1.msra.mxu0 0.0
    %108 = vmatprep.subr.mxu0 0.0
    %109 = vmatpush1.msra.mxu0 0.0
    %110 = vmatprep.subr.mxu0 0.0
    %111 = vmatpush1.msra.mxu0 0.0
    %112 = vmatprep.subr.mxu0 0.0
    %113 = vmatpush1.msra.mxu0 0.0
    %114 = vmatprep.subr.mxu0 0.0
    %115 = vmatpush1.msra.mxu0 0.0
    %116 = vmatprep.subr.mxu0 0.0
    %117 = vmatpush1.msra.mxu0 0.0
    %118 = vmatprep.subr.mxu0 0.0
    %119 = vmatpush1.msra.mxu0 0.0
    %120 = vmatprep.subr.mxu0 0.0
    %121 = vmatpush1.msra.mxu0 0.0
    %122 = vmatprep.subr.mxu0 0.0
    %123 = vmatpush1.msra.mxu0 0.0
    %124 = vmatprep.subr.mxu0 0.0
    %125 = vmatpush1.msra.mxu0 0.0
    %126 = vmatprep.subr.mxu0 0.0
    %127 = vmatpush1.msra.mxu0 0.0
    %128 = vmatprep.subr.mxu0 0.0
    %129 = vmatpush1.msra.mxu0 0.0
    %130 = vmatprep.subr.mxu0 0.0
    %131 = vmatpush1.msra.mxu0 0.0
    %132 = vmatprep.subr.mxu0 0.0
    %133 = vmatpush1.msra.mxu0 0.0
    %134 = vmatprep.subr.mxu0 0.0
    %135 = vmatpush1.msra.mxu0 0.0
    %136 = vmatprep.subr.mxu0 0.0
    %137 = vmatpush1.msra.mxu0 0.0
    %138 = vmatprep.subr.mxu0 0.0
    %139 = vmatpush1.msra.mxu0 0.0
    %140 = vmatprep.subr.mxu0 0.0
    %141 = vmatpush1.msra.mxu0 0.0
    %142 = vmatprep.subr.mxu0 0.0
    %143 = vmatpush1.msra.mxu0 0.0
    %144 = vmatprep.subr.mxu0 0.0
    %145 = vmatpush1.msra.mxu0 0.0
    %146 = vmatprep.mubr.f32.mxu0 0.0
    %147 = vmatmul.mubr.f32.gmra.mrb[0].mxu0 %v67
    %v148 = vpop.f32.mrb[0].mxu0
    %v149 = vadd.f32 %v53, %v148
    %v150 = vpop.f32.mrb[0].mxu0
    %v151 = vadd.f32 %v57, %v150
    %152 = vmatprep.mubr.f32.mxu0 0.0
    %153 = vmatmul.mubr.f32.gmra.mrb[0].mxu0 %v70
    %v154 = vpop.f32.mrb[0].mxu0
    %v155 = vadd.f32 %v53, %v154
    %v156 = vpop.f32.mrb[0].mxu0
    %v157 = vadd.f32 %v57, %v156
    %158 = vdwg.mxu0
    %159 = vmatprep.subr.mxu0 0.0
    %160 = vmatpush1.msra.mxu0 %v80
    %161 = vmatprep.subr.mxu0 0.0
    %162 = vmatpush1.msra.mxu0 0.0
    %163 = vmatprep.subr.mxu0 0.0
    %164 = vmatpush1.msra.mxu0 0.0
    %165 = vmatprep.subr.mxu0 0.0
    %166 = vmatpush1.msra.mxu0 0.0
    %167 = vmatprep.subr.mxu0 0.0
    %168 = vmatpush1.msra.mxu0 0.0
    %169 = vmatprep.subr.mxu0 0.0
    %170 = vmatpush1.msra.mxu0 0.0
    %171 = vmatprep.subr.mxu0 0.0
    %172 = vmatpush1.msra.mxu0 0.0
    %173 = vmatprep.subr.mxu0 0.0
    %174 = vmatpush1.msra.mxu0 0.0
    %175 = vmatprep.subr.mxu0 0.0
    %176 = vmatpush1.msra.mxu0 0.0
    %177 = vmatprep.subr.mxu0 0.0
    %178 = vmatpush1.msra.mxu0 0.0
    %179 = vmatprep.subr.mxu0 0.0
    %180 = vmatpush1.msra.mxu0 0.0
    %181 = vmatprep.subr.mxu0 0.0
    %182 = vmatpush1.msra.mxu0 0.0
    %183 = vmatprep.subr.mxu0 0.0
    %184 = vmatpush1.msra.mxu0 0.0
    %185 = vmatprep.subr.mxu0 0.0
    %186 = vmatpush1.msra.mxu0 0.0
    %187 = vmatprep.subr.mxu0 0.0
    %188 = vmatpush1.msra.mxu0 0.0
    %189 = vmatprep.subr.mxu0 0.0
    %190 = vmatpush1.msra.mxu0 0.0
    %191 = vmatprep.subr.mxu0 0.0
    %192 = vmatpush1.msra.mxu0 0.0
    %193 = vmatprep.subr.mxu0 0.0
    %194 = vmatpush1.msra.mxu0 0.0
    %195 = vmatprep.subr.mxu0 0.0
    %196 = vmatpush1.msra.mxu0 0.0
    %197 = vmatprep.subr.mxu0 0.0
    %198 = vmatpush1.msra.mxu0 0.0
    %199 = vmatprep.subr.mxu0 0.0
    %200 = vmatpush1.msra.mxu0 0.0
    %201 = vmatprep.subr.mxu0 0.0
    %202 = vmatpush1.msra.mxu0 0.0
    %203 = vmatprep.subr.mxu0 0.0
    %204 = vmatpush1.msra.mxu0 0.0
    %205 = vmatprep.subr.mxu0 0.0
    %206 = vmatpush1.msra.mxu0 0.0
    %207 = vmatprep.subr.mxu0 0.0
    %208 = vmatpush1.msra.mxu0 0.0
    %209 = vmatprep.subr.mxu0 0.0
    %210 = vmatpush1.msra.mxu0 0.0
    %211 = vmatprep.subr.mxu0 0.0
    %212 = vmatpush1.msra.mxu0 0.0
    %213 = vmatprep.subr.mxu0 0.0
    %214 = vmatpush1.msra.mxu0 0.0
    %215 = vmatprep.subr.mxu0 0.0
    %216 = vmatpush1.msra.mxu0 0.0
    %217 = vmatprep.subr.mxu0 0.0
    %218 = vmatpush1.msra.mxu0 0.0
    %219 = vmatprep.subr.mxu0 0.0
    %220 = vmatpush1.msra.mxu0 0.0
    %221 = vmatprep.subr.mxu0 0.0
    %222 = vmatpush1.msra.mxu0 0.0
    %223 = vmatprep.mubr.f32.mxu0 0.0
    %224 = vmatmul.mubr.f32.gmra.mrb[0].mxu0 %v67
    %v225 = vpop.f32.mrb[0].mxu0
    %v226 = vadd.f32 %v61, %v225
    %v227 = vpop.f32.mrb[0].mxu0
    %228 = vmatprep.mubr.f32.mxu0 0.0
    %229 = vmatmul.mubr.f32.gmra.mrb[0].mxu0 %v70
    %v230 = vpop.f32.mrb[0].mxu0
    %v231 = vadd.f32 %v61, %v230
    %v232 = vpop.f32.mrb[0].mxu0
    %233 = vdwg.mxu0
    %v234 = vld [vmem:[#allocation2] sm:$0xff]
    %v235 = vld [vmem:[#allocation2 + $0x8] sm:$0xff]
    %v236 = vld [vmem:[#allocation2 + $0x10] sm:$0xff]
    %v237 = vld [vmem:[#allocation2 + $0x18] sm:$0xff]
    %v238 = vld [vmem:[#allocation2 + $0x20] sm:$0xff]
    %v239 = vld [vmem:[#allocation2 + $0x28] sm:$0xff]
    %v240 = vld [vmem:[#allocation2 + $0x30] sm:$0xff]
    %v241 = vld [vmem:[#allocation2 + $0x38] sm:$0xff]
    %v242 = vld [vmem:[#allocation2 + $0x40] sm:$0xff]
    %v243 = vld [vmem:[#allocation2 + $0x48] sm:$0xff]
    %v244 = vld [vmem:[#allocation2 + $0x50] sm:$0xff]
    %v245 = vld [vmem:[#allocation2 + $0x58] sm:$0xff]
    %v246 = vld [vmem:[#allocation2 + $0x60] sm:$0xff]
    %v247 = vld [vmem:[#allocation2 + $0x68] sm:$0xff]
    %v248 = vld [vmem:[#allocation2 + $0x70] sm:$0xff]
    %v249 = vld [vmem:[#allocation2 + $0x78] sm:$0xff]
    %v250 = vld [vmem:[#allocation2 + $0x80] sm:$0xff]
    %v251 = vld [vmem:[#allocation2 + $0x88] sm:$0xff]
    %v252 = vld [vmem:[#allocation2 + $0x90] sm:$0xff]
    %v253 = vld [vmem:[#allocation2 + $0x98] sm:$0xff]
    %v254 = vld [vmem:[#allocation2 + $0xa0] sm:$0xff]
    %v255 = vld [vmem:[#allocation2 + $0xa8] sm:$0xff]
    %v256 = vld [vmem:[#allocation2 + $0xb0] sm:$0xff]
    %v257 = vld [vmem:[#allocation2 + $0xb8] sm:$0xff]
    %v258 = vld [vmem:[#allocation2 + $0xc0] sm:$0xff]
    %v259 = vld [vmem:[#allocation2 + $0xc8] sm:$0xff]
    %v260 = vld [vmem:[#allocation2 + $0xd0] sm:$0xff]
    %v261 = vld [vmem:[#allocation2 + $0xd8] sm:$0xff]
    %v262 = vld [vmem:[#allocation2 + $0xe0] sm:$0xff]
    %v263 = vld [vmem:[#allocation2 + $0xe8] sm:$0xff]
    %v264 = vld [vmem:[#allocation2 + $0xf0] sm:$0xff]
    %v265 = vld [vmem:[#allocation2 + $0xf8] sm:$0xff]
    %v266 = vld [vmem:[#allocation2 + $0x100] sm:$0xff]
    %v267 = vld [vmem:[#allocation2 + $0x108] sm:$0xff]
    %v268 = vld [vmem:[#allocation2 + $0x110] sm:$0xff]
    %v269 = vld [vmem:[#allocation2 + $0x118] sm:$0xff]
    %v270 = vld [vmem:[#allocation2 + $0x120] sm:$0xff]
    %v271 = vld [vmem:[#allocation2 + $0x128] sm:$0xff]
    %v272 = vld [vmem:[#allocation2 + $0x130] sm:$0xff]
    %v273 = vld [vmem:[#allocation2 + $0x138] sm:$0xff]
    %v274 = vld [vmem:[#allocation2 + $0x140] sm:$0xff]
    %v275 = vld [vmem:[#allocation2 + $0x148] sm:$0xff]
    %v276 = vld [vmem:[#allocation2 + $0x150] sm:$0xff]
    %v277 = vld [vmem:[#allocation2 + $0x158] sm:$0xff]
    %v278 = vld [vmem:[#allocation2 + $0x160] sm:$0xff]
    %v279 = vld [vmem:[#allocation2 + $0x168] sm:$0xff]
    %v280 = vld [vmem:[#allocation2 + $0x170] sm:$0xff]
    %v281 = vld [vmem:[#allocation2 + $0x178] sm:$0xff]
    %v282 = vld [vmem:[%s5] sm:$0x1]
    %v283 = vld [vmem:[%s1] sm:$0x3]
    %284 = vmatprep.subr.mxu0 %v235
    %285 = vmatpush1.msra.mxu0 %v234
    %286 = vmatprep.subr.mxu0 %v238
    %287 = vmatpush1.msra.mxu0 %v237
    %288 = vmatprep.subr.mxu0 %v241
    %289 = vmatpush1.msra.mxu0 %v240
    %290 = vmatprep.subr.mxu0 %v244
    %291 = vmatpush1.msra.mxu0 %v243
    %292 = vmatprep.subr.mxu0 %v247
    %293 = vmatpush1.msra.mxu0 %v246
    %294 = vmatprep.subr.mxu0 %v250
    %295 = vmatpush1.msra.mxu0 %v249
    %296 = vmatprep.subr.mxu0 %v253
    %297 = vmatpush1.msra.mxu0 %v252
    %298 = vmatprep.subr.mxu0 %v256
    %299 = vmatpush1.msra.mxu0 %v255
    %300 = vmatprep.subr.mxu0 %v259
    %301 = vmatpush1.msra.mxu0 %v258
    %302 = vmatprep.subr.mxu0 %v262
    %303 = vmatpush1.msra.mxu0 %v261
    %304 = vmatprep.subr.mxu0 %v265
    %305 = vmatpush1.msra.mxu0 %v264
    %306 = vmatprep.subr.mxu0 %v268
    %307 = vmatpush1.msra.mxu0 %v267
    %308 = vmatprep.subr.mxu0 %v271
    %309 = vmatpush1.msra.mxu0 %v270
    %310 = vmatprep.subr.mxu0 %v274
    %311 = vmatpush1.msra.mxu0 %v273
    %312 = vmatprep.subr.mxu0 %v277
    %313 = vmatpush1.msra.mxu0 %v276
    %314 = vmatprep.subr.mxu0 %v280
    %315 = vmatpush1.msra.mxu0 %v279
    %316 = vmatprep.subr.mxu0 0.0
    %317 = vmatpush1.msra.mxu0 0.0
    %318 = vmatprep.subr.mxu0 0.0
    %319 = vmatpush1.msra.mxu0 0.0
    %320 = vmatprep.subr.mxu0 0.0
    %321 = vmatpush1.msra.mxu0 0.0
    %322 = vmatprep.subr.mxu0 0.0
    %323 = vmatpush1.msra.mxu0 0.0
    %324 = vmatprep.subr.mxu0 0.0
    %325 = vmatpush1.msra.mxu0 0.0
    %326 = vmatprep.subr.mxu0 0.0
    %327 = vmatpush1.msra.mxu0 0.0
    %328 = vmatprep.subr.mxu0 0.0
    %329 = vmatpush1.msra.mxu0 0.0
    %330 = vmatprep.subr.mxu0 0.0
    %331 = vmatpush1.msra.mxu0 0.0
    %332 = vmatprep.subr.mxu0 0.0
    %333 = vmatpush1.msra.mxu0 0.0
    %334 = vmatprep.subr.mxu0 0.0
    %335 = vmatpush1.msra.mxu0 0.0
    %336 = vmatprep.subr.mxu0 0.0
    %337 = vmatpush1.msra.mxu0 0.0
    %338 = vmatprep.subr.mxu0 0.0
    %339 = vmatpush1.msra.mxu0 0.0
    %340 = vmatprep.subr.mxu0 0.0
    %341 = vmatpush1.msra.mxu0 0.0
    %342 = vmatprep.subr.mxu0 0.0
    %343 = vmatpush1.msra.mxu0 0.0
    %344 = vmatprep.subr.mxu0 0.0
    %345 = vmatpush1.msra.mxu0 0.0
    %346 = vmatprep.subr.mxu0 0.0
    %347 = vmatpush1.msra.mxu0 0.0
    %348 = vmatprep.mubr.f32.mxu0 0.0
    %349 = vmatmul.mubr.f32.gmra.mrb[0].mxu0 %v283
    %v350 = vpop.f32.mrb[0].mxu0
    %v351 = vadd.f32 0.0, %v350
    %v352 = vpop.f32.mrb[0].mxu0
    %v353 = vadd.f32 0.0, %v352
    %354 = vdwg.mxu0
    %355 = vmatprep.subr.mxu0 0.0
    %356 = vmatpush1.msra.mxu0 %v236
    %357 = vmatprep.subr.mxu0 0.0
    %358 = vmatpush1.msra.mxu0 %v239
    %359 = vmatprep.subr.mxu0 0.0
    %360 = vmatpush1.msra.mxu0 %v242
    %361 = vmatprep.subr.mxu0 0.0
    %362 = vmatpush1.msra.mxu0 %v245
    %363 = vmatprep.subr.mxu0 0.0
    %364 = vmatpush1.msra.mxu0 %v248
    %365 = vmatprep.subr.mxu0 0.0
    %366 = vmatpush1.msra.mxu0 %v251
    %367 = vmatprep.subr.mxu0 0.0
    %368 = vmatpush1.msra.mxu0 %v254
    %369 = vmatprep.subr.mxu0 0.0
    %370 = vmatpush1.msra.mxu0 %v257
    %371 = vmatprep.subr.mxu0 0.0
    %372 = vmatpush1.msra.mxu0 %v260
    %373 = vmatprep.subr.mxu0 0.0
    %374 = vmatpush1.msra.mxu0 %v263
    %375 = vmatprep.subr.mxu0 0.0
    %376 = vmatpush1.msra.mxu0 %v266
    %377 = vmatprep.subr.mxu0 0.0
    %378 = vmatpush1.msra.mxu0 %v269
    %379 = vmatprep.subr.mxu0 0.0
    %380 = vmatpush1.msra.mxu0 %v272
    %381 = vmatprep.subr.mxu0 0.0
    %382 = vmatpush1.msra.mxu0 %v275
    %383 = vmatprep.subr.mxu0 0.0
    %384 = vmatpush1.msra.mxu0 %v278
    %385 = vmatprep.subr.mxu0 0.0
    %386 = vmatpush1.msra.mxu0 %v281
    %387 = vmatprep.subr.mxu0 0.0
    %388 = vmatpush1.msra.mxu0 0.0
    %389 = vmatprep.subr.mxu0 0.0
    %390 = vmatpush1.msra.mxu0 0.0
    %391 = vmatprep.subr.mxu0 0.0
    %392 = vmatpush1.msra.mxu0 0.0
    %393 = vmatprep.subr.mxu0 0.0
    %394 = vmatpush1.msra.mxu0 0.0
    %395 = vmatprep.subr.mxu0 0.0
    %396 = vmatpush1.msra.mxu0 0.0
    %397 = vmatprep.subr.mxu0 0.0
    %398 = vmatpush1.msra.mxu0 0.0
    %399 = vmatprep.subr.mxu0 0.0
    %400 = vmatpush1.msra.mxu0 0.0
    %401 = vmatprep.subr.mxu0 0.0
    %402 = vmatpush1.msra.mxu0 0.0
    %403 = vmatprep.subr.mxu0 0.0
    %404 = vmatpush1.msra.mxu0 0.0
    %405 = vmatprep.subr.mxu0 0.0
    %406 = vmatpush1.msra.mxu0 0.0
    %407 = vmatprep.subr.mxu0 0.0
    %408 = vmatpush1.msra.mxu0 0.0
    %409 = vmatprep.subr.mxu0 0.0
    %410 = vmatpush1.msra.mxu0 0.0
    %411 = vmatprep.subr.mxu0 0.0
    %412 = vmatpush1.msra.mxu0 0.0
    %413 = vmatprep.subr.mxu0 0.0
    %414 = vmatpush1.msra.mxu0 0.0
    %415 = vmatprep.subr.mxu0 0.0
    %416 = vmatpush1.msra.mxu0 0.0
    %417 = vmatprep.subr.mxu0 0.0
    %418 = vmatpush1.msra.mxu0 0.0
    %419 = vmatprep.mubr.f32.mxu0 0.0
    %420 = vmatmul.mubr.f32.gmra.mrb[0].mxu0 %v283
    %v421 = vpop.f32.mrb[0].mxu0
    %v422 = vadd.f32 0.0, %v421
    %v423 = vpop.f32.mrb[0].mxu0
    %424 = vdwg.mxu0
    %v426 = vrot.slane %v351, 1
    %v429 = vadd.f32 %v149, %v351
    %v430 = vadd.f32 %v155, %v426
    %v431 = vmul.f32 %v429, 0.5
    %v432 = vmul.f32 %v430, 0.5
    %v433 = vtanh.pop %v431
    %v434 = vtanh.pop %v432
    %v435 = vmul.f32 %v433, 0.5
    %v436 = vmul.f32 %v434, 0.5
    %v437 = vadd.f32 %v435, 0.5
    %v438 = vadd.f32 %v436, 0.5
    %v440 = vrot.slane %v353, 1
    %v443 = vadd.f32 %v151, %v353
    %v444 = vadd.f32 %v157, %v440
    %v445 = vmul.f32 %v443, 0.5
    %v446 = vmul.f32 %v444, 0.5
    %v447 = vtanh.pop %v445
    %v448 = vtanh.pop %v446
    %v449 = vmul.f32 %v447, 0.5
    %v450 = vmul.f32 %v448, 0.5
    %v451 = vadd.f32 %v449, 0.5
    %v452 = vadd.f32 %v450, 0.5
    %v454 = vlaneseq
    %v455 = vshrl.u32 %v454, 7
    %v456 = vsub.s32 0, %v455
    %v457 = vrot.slane %v282, %v456
    %v459 = vadd.f32 %v422, %v457
    %v461 = vrot.slane %v459, 1
    %v464 = vmul.f32 %v437, %v459
    %v465 = vmul.f32 %v438, %v461
    %v466 = vadd.f32 %v226, %v464
    %v467 = vadd.f32 %v231, %v465
    %v468 = vtanh.pop %v466
    %v469 = vtanh.pop %v467
    %v470 = vsub.f32 1.0, %v451
    %v471 = vsub.f32 1.0, %v452
    %v472 = vmul.f32 %v470, %v468
    %v473 = vmul.f32 %v471, %v469
    %v475 = vrot.slane %v283, 1
    %v478 = vmul.f32 %v451, %v283
    %v479 = vmul.f32 %v452, %v475
    %v480 = vadd.f32 %v472, %v478
    %v481 = vadd.f32 %v473, %v479
    %v484 = vrot.slane %v481, 7
    %vm485 = vcmask 1041409
    %v486 = vsel %vm485, %v484, %v480
    %488 = vmatprep.subr.mxu0 %v235
    %489 = vmatpush1.msra.mxu0 %v234
    %490 = vmatprep.subr.mxu0 %v238
    %491 = vmatpush1.msra.mxu0 %v237
    %492 = vmatprep.subr.mxu0 %v241
    %493 = vmatpush1.msra.mxu0 %v240
    %494 = vmatprep.subr.mxu0 %v244
    %495 = vmatpush1.msra.mxu0 %v243
    %496 = vmatprep.subr.mxu0 %v247
    %497 = vmatpush1.msra.mxu0 %v246
    %498 = vmatprep.subr.mxu0 %v250
    %499 = vmatpush1.msra.mxu0 %v249
    %500 = vmatprep.subr.mxu0 %v253
    %501 = vmatpush1.msra.mxu0 %v252
    %502 = vmatprep.subr.mxu0 %v256
    %503 = vmatpush1.msra.mxu0 %v255
    %504 = vmatprep.subr.mxu0 %v259
    %505 = vmatpush1.msra.mxu0 %v258
    %506 = vmatprep.subr.mxu0 %v262
    %507 = vmatpush1.msra.mxu0 %v261
    %508 = vmatprep.subr.mxu0 %v265
    %509 = vmatpush1.msra.mxu0 %v264
    %510 = vmatprep.subr.mxu0 %v268
    %511 = vmatpush1.msra.mxu0 %v267
    %512 = vmatprep.subr.mxu0 %v271
    %513 = vmatpush1.msra.mxu0 %v270
    %514 = vmatprep.subr.mxu0 %v274
    %515 = vmatpush1.msra.mxu0 %v273
    %516 = vmatprep.subr.mxu0 %v277
    %517 = vmatpush1.msra.mxu0 %v276
    %518 = vmatprep.subr.mxu0 %v280
    %519 = vmatpush1.msra.mxu0 %v279
    %520 = vmatprep.subr.mxu0 0.0
    %521 = vmatpush1.msra.mxu0 0.0
    %522 = vmatprep.subr.mxu0 0.0
    %523 = vmatpush1.msra.mxu0 0.0
    %524 = vmatprep.subr.mxu0 0.0
    %525 = vmatpush1.msra.mxu0 0.0
    %526 = vmatprep.subr.mxu0 0.0
    %527 = vmatpush1.msra.mxu0 0.0
    %528 = vmatprep.subr.mxu0 0.0
    %529 = vmatpush1.msra.mxu0 0.0
    %530 = vmatprep.subr.mxu0 0.0
    %531 = vmatpush1.msra.mxu0 0.0
    %532 = vmatprep.subr.mxu0 0.0
    %533 = vmatpush1.msra.mxu0 0.0
    %534 = vmatprep.subr.mxu0 0.0
    %535 = vmatpush1.msra.mxu0 0.0
    %536 = vmatprep.subr.mxu0 0.0
    %537 = vmatpush1.msra.mxu0 0.0
    %538 = vmatprep.subr.mxu0 0.0
    %539 = vmatpush1.msra.mxu0 0.0
    %540 = vmatprep.subr.mxu0 0.0
    %541 = vmatpush1.msra.mxu0 0.0
    %542 = vmatprep.subr.mxu0 0.0
    %543 = vmatpush1.msra.mxu0 0.0
    %544 = vmatprep.subr.mxu0 0.0
    %545 = vmatpush1.msra.mxu0 0.0
    %546 = vmatprep.subr.mxu0 0.0
    %547 = vmatpush1.msra.mxu0 0.0
    %548 = vmatprep.subr.mxu0 0.0
    %549 = vmatpush1.msra.mxu0 0.0
    %550 = vmatprep.subr.mxu0 0.0
    %551 = vmatpush1.msra.mxu0 0.0
    %552 = vmatprep.mubr.f32.mxu0 0.0
    %553 = vmatmul.mubr.f32.gmra.mrb[0].mxu0 %v486
    %v554 = vpop.f32.mrb[0].mxu0
    %v555 = vadd.f32 0.0, %v554
    %v556 = vpop.f32.mrb[0].mxu0
    %v557 = vadd.f32 0.0, %v556
    %558 = vdwg.mxu0
    %559 = vmatprep.subr.mxu0 0.0
    %560 = vmatpush1.msra.mxu0 %v236
    %561 = vmatprep.subr.mxu0 0.0
    %562 = vmatpush1.msra.mxu0 %v239
    %563 = vmatprep.subr.mxu0 0.0
    %564 = vmatpush1.msra.mxu0 %v242
    %565 = vmatprep.subr.mxu0 0.0
    %566 = vmatpush1.msra.mxu0 %v245
    %567 = vmatprep.subr.mxu0 0.0
    %568 = vmatpush1.msra.mxu0 %v248
    %569 = vmatprep.subr.mxu0 0.0
    %570 = vmatpush1.msra.mxu0 %v251
    %571 = vmatprep.subr.mxu0 0.0
    %572 = vmatpush1.msra.mxu0 %v254
    %573 = vmatprep.subr.mxu0 0.0
    %574 = vmatpush1.msra.mxu0 %v257
    %575 = vmatprep.subr.mxu0 0.0
    %576 = vmatpush1.msra.mxu0 %v260
    %577 = vmatprep.subr.mxu0 0.0
    %578 = vmatpush1.msra.mxu0 %v263
    %579 = vmatprep.subr.mxu0 0.0
    %580 = vmatpush1.msra.mxu0 %v266
    %581 = vmatprep.subr.mxu0 0.0
    %582 = vmatpush1.msra.mxu0 %v269
    %583 = vmatprep.subr.mxu0 0.0
    %584 = vmatpush1.msra.mxu0 %v272
    %585 = vmatprep.subr.mxu0 0.0
    %586 = vmatpush1.msra.mxu0 %v275
    %587 = vmatprep.subr.mxu0 0.0
    %588 = vmatpush1.msra.mxu0 %v278
    %589 = vmatprep.subr.mxu0 0.0
    %590 = vmatpush1.msra.mxu0 %v281
    %591 = vmatprep.subr.mxu0 0.0
    %592 = vmatpush1.msra.mxu0 0.0
    %593 = vmatprep.subr.mxu0 0.0
    %594 = vmatpush1.msra.mxu0 0.0
    %595 = vmatprep.subr.mxu0 0.0
    %596 = vmatpush1.msra.mxu0 0.0
    %597 = vmatprep.subr.mxu0 0.0
    %598 = vmatpush1.msra.mxu0 0.0
    %599 = vmatprep.subr.mxu0 0.0
    %600 = vmatpush1.msra.mxu0 0.0
    %601 = vmatprep.subr.mxu0 0.0
    %602 = vmatpush1.msra.mxu0 0.0
    %603 = vmatprep.subr.mxu0 0.0
    %604 = vmatpush1.msra.mxu0 0.0
    %605 = vmatprep.subr.mxu0 0.0
    %606 = vmatpush1.msra.mxu0 0.0
    %607 = vmatprep.subr.mxu0 0.0
    %608 = vmatpush1.msra.mxu0 0.0
    %609 = vmatprep.subr.mxu0 0.0
    %610 = vmatpush1.msra.mxu0 0.0
    %611 = vmatprep.subr.mxu0 0.0
    %612 = vmatpush1.msra.mxu0 0.0
    %613 = vmatprep.subr.mxu0 0.0
    %614 = vmatpush1.msra.mxu0 0.0
    %615 = vmatprep.subr.mxu0 0.0
    %616 = vmatpush1.msra.mxu0 0.0
    %617 = vmatprep.subr.mxu0 0.0
    %618 = vmatpush1.msra.mxu0 0.0
    %619 = vmatprep.subr.mxu0 0.0
    %620 = vmatpush1.msra.mxu0 0.0
    %621 = vmatprep.subr.mxu0 0.0
    %622 = vmatpush1.msra.mxu0 0.0
    %623 = vmatprep.mubr.f32.mxu0 0.0
    %624 = vmatmul.mubr.f32.gmra.mrb[0].mxu0 %v486
    %v625 = vpop.f32.mrb[0].mxu0
    %v626 = vadd.f32 0.0, %v625
    %v627 = vpop.f32.mrb[0].mxu0
    %628 = vdwg.mxu0
    %v630 = vrot.slane %v555, 7
    %v633 = vadd.f32 %v149, %v630
    %v634 = vadd.f32 %v155, %v555
    %v635 = vmul.f32 %v633, 0.5
    %v636 = vmul.f32 %v634, 0.5
    %v637 = vtanh.pop %v635
    %v638 = vtanh.pop %v636
    %v639 = vmul.f32 %v637, 0.5
    %v640 = vmul.f32 %v638, 0.5
    %v641 = vadd.f32 %v639, 0.5
    %v642 = vadd.f32 %v640, 0.5
    %v644 = vrot.slane %v557, 7
    %v647 = vadd.f32 %v151, %v644
    %v648 = vadd.f32 %v157, %v557
    %v649 = vmul.f32 %v647, 0.5
    %v650 = vmul.f32 %v648, 0.5
    %v651 = vtanh.pop %v649
    %v652 = vtanh.pop %v650
    %v653 = vmul.f32 %v651, 0.5
    %v654 = vmul.f32 %v652, 0.5
    %v655 = vadd.f32 %v653, 0.5
    %v656 = vadd.f32 %v654, 0.5
    %v657 = vadd.f32 %v626, %v457
    %v659 = vrot.slane %v657, 7
    %v662 = vmul.f32 %v641, %v659
    %v663 = vmul.f32 %v642, %v657
    %v664 = vadd.f32 %v226, %v662
    %v665 = vadd.f32 %v231, %v663
    %v666 = vtanh.pop %v664
    %v667 = vtanh.pop %v665
    %v668 = vsub.f32 1.0, %v655
    %v669 = vsub.f32 1.0, %v656
    %v670 = vmul.f32 %v668, %v666
    %v671 = vmul.f32 %v669, %v667
    %v672 = vrot.slane %v480, 7
    %v675 = vmul.f32 %v655, %v672
    %v676 = vmul.f32 %v656, %v484
    %v677 = vadd.f32 %v670, %v675
    %v678 = vadd.f32 %v671, %v676
    %v681 = vrot.slane %v677, 1
    %v682 = vsel %vm485, %v678, %v681
    %684 = vmatprep.subr.mxu0 %v235
    %685 = vmatpush1.msra.mxu0 %v234
    %686 = vmatprep.subr.mxu0 %v238
    %687 = vmatpush1.msra.mxu0 %v237
    %688 = vmatprep.subr.mxu0 %v241
    %689 = vmatpush1.msra.mxu0 %v240
    %690 = vmatprep.subr.mxu0 %v244
    %691 = vmatpush1.msra.mxu0 %v243
    %692 = vmatprep.subr.mxu0 %v247
    %693 = vmatpush1.msra.mxu0 %v246
    %694 = vmatprep.subr.mxu0 %v250
    %695 = vmatpush1.msra.mxu0 %v249
    %696 = vmatprep.subr.mxu0 %v253
    %697 = vmatpush1.msra.mxu0 %v252
    %698 = vmatprep.subr.mxu0 %v256
    %699 = vmatpush1.msra.mxu0 %v255
    %700 = vmatprep.subr.mxu0 %v259
    %701 = vmatpush1.msra.mxu0 %v258
    %702 = vmatprep.subr.mxu0 %v262
    %703 = vmatpush1.msra.mxu0 %v261
    %704 = vmatprep.subr.mxu0 %v265
    %705 = vmatpush1.msra.mxu0 %v264
    %706 = vmatprep.subr.mxu0 %v268
    %707 = vmatpush1.msra.mxu0 %v267
    %708 = vmatprep.subr.mxu0 %v271
    %709 = vmatpush1.msra.mxu0 %v270
    %710 = vmatprep.subr.mxu0 %v274
    %711 = vmatpush1.msra.mxu0 %v273
    %712 = vmatprep.subr.mxu0 %v277
    %713 = vmatpush1.msra.mxu0 %v276
    %714 = vmatprep.subr.mxu0 %v280
    %715 = vmatpush1.msra.mxu0 %v279
    %716 = vmatprep.subr.mxu0 0.0
    %717 = vmatpush1.msra.mxu0 0.0
    %718 = vmatprep.subr.mxu0 0.0
    %719 = vmatpush1.msra.mxu0 0.0
    %720 = vmatprep.subr.mxu0 0.0
    %721 = vmatpush1.msra.mxu0 0.0
    %722 = vmatprep.subr.mxu0 0.0
    %723 = vmatpush1.msra.mxu0 0.0
    %724 = vmatprep.subr.mxu0 0.0
    %725 = vmatpush1.msra.mxu0 0.0
    %726 = vmatprep.subr.mxu0 0.0
    %727 = vmatpush1.msra.mxu0 0.0
    %728 = vmatprep.subr.mxu0 0.0
    %729 = vmatpush1.msra.mxu0 0.0
    %730 = vmatprep.subr.mxu0 0.0
    %731 = vmatpush1.msra.mxu0 0.0
    %732 = vmatprep.subr.mxu0 0.0
    %733 = vmatpush1.msra.mxu0 0.0
    %734 = vmatprep.subr.mxu0 0.0
    %735 = vmatpush1.msra.mxu0 0.0
    %736 = vmatprep.subr.mxu0 0.0
    %737 = vmatpush1.msra.mxu0 0.0
    %738 = vmatprep.subr.mxu0 0.0
    %739 = vmatpush1.msra.mxu0 0.0
    %740 = vmatprep.subr.mxu0 0.0
    %741 = vmatpush1.msra.mxu0 0.0
    %742 = vmatprep.subr.mxu0 0.0
    %743 = vmatpush1.msra.mxu0 0.0
    %744 = vmatprep.subr.mxu0 0.0
    %745 = vmatpush1.msra.mxu0 0.0
    %746 = vmatprep.subr.mxu0 0.0
    %747 = vmatpush1.msra.mxu0 0.0
    %748 = vmatprep.mubr.f32.mxu0 0.0
    %749 = vmatmul.mubr.f32.gmra.mrb[0].mxu0 %v682
    %v750 = vpop.f32.mrb[0].mxu0
    %v751 = vadd.f32 0.0, %v750
    %v752 = vpop.f32.mrb[0].mxu0
    %v753 = vadd.f32 0.0, %v752
    %754 = vdwg.mxu0
    %755 = vmatprep.subr.mxu0 0.0
    %756 = vmatpush1.msra.mxu0 %v236
    %757 = vmatprep.subr.mxu0 0.0
    %758 = vmatpush1.msra.mxu0 %v239
    %759 = vmatprep.subr.mxu0 0.0
    %760 = vmatpush1.msra.mxu0 %v242
    %761 = vmatprep.subr.mxu0 0.0
    %762 = vmatpush1.msra.mxu0 %v245
    %763 = vmatprep.subr.mxu0 0.0
    %764 = vmatpush1.msra.mxu0 %v248
    %765 = vmatprep.subr.mxu0 0.0
    %766 = vmatpush1.msra.mxu0 %v251
    %767 = vmatprep.subr.mxu0 0.0
    %768 = vmatpush1.msra.mxu0 %v254
    %769 = vmatprep.subr.mxu0 0.0
    %770 = vmatpush1.msra.mxu0 %v257
    %771 = vmatprep.subr.mxu0 0.0
    %772 = vmatpush1.msra.mxu0 %v260
    %773 = vmatprep.subr.mxu0 0.0
    %774 = vmatpush1.msra.mxu0 %v263
    %775 = vmatprep.subr.mxu0 0.0
    %776 = vmatpush1.msra.mxu0 %v266
    %777 = vmatprep.subr.mxu0 0.0
    %778 = vmatpush1.msra.mxu0 %v269
    %779 = vmatprep.subr.mxu0 0.0
    %780 = vmatpush1.msra.mxu0 %v272
    %781 = vmatprep.subr.mxu0 0.0
    %782 = vmatpush1.msra.mxu0 %v275
    %783 = vmatprep.subr.mxu0 0.0
    %784 = vmatpush1.msra.mxu0 %v278
    %785 = vmatprep.subr.mxu0 0.0
    %786 = vmatpush1.msra.mxu0 %v281
    %787 = vmatprep.subr.mxu0 0.0
    %788 = vmatpush1.msra.mxu0 0.0
    %789 = vmatprep.subr.mxu0 0.0
    %790 = vmatpush1.msra.mxu0 0.0
    %791 = vmatprep.subr.mxu0 0.0
    %792 = vmatpush1.msra.mxu0 0.0
    %793 = vmatprep.subr.mxu0 0.0
    %794 = vmatpush1.msra.mxu0 0.0
    %795 = vmatprep.subr.mxu0 0.0
    %796 = vmatpush1.msra.mxu0 0.0
    %797 = vmatprep.subr.mxu0 0.0
    %798 = vmatpush1.msra.mxu0 0.0
    %799 = vmatprep.subr.mxu0 0.0
    %800 = vmatpush1.msra.mxu0 0.0
    %801 = vmatprep.subr.mxu0 0.0
    %802 = vmatpush1.msra.mxu0 0.0
    %803 = vmatprep.subr.mxu0 0.0
    %804 = vmatpush1.msra.mxu0 0.0
    %805 = vmatprep.subr.mxu0 0.0
    %806 = vmatpush1.msra.mxu0 0.0
    %807 = vmatprep.subr.mxu0 0.0
    %808 = vmatpush1.msra.mxu0 0.0
    %809 = vmatprep.subr.mxu0 0.0
    %810 = vmatpush1.msra.mxu0 0.0
    %811 = vmatprep.subr.mxu0 0.0
    %812 = vmatpush1.msra.mxu0 0.0
    %813 = vmatprep.subr.mxu0 0.0
    %814 = vmatpush1.msra.mxu0 0.0
    %815 = vmatprep.subr.mxu0 0.0
    %816 = vmatpush1.msra.mxu0 0.0
    %817 = vmatprep.subr.mxu0 0.0
    %818 = vmatpush1.msra.mxu0 0.0
    %819 = vmatprep.mubr.f32.mxu0 0.0
    %820 = vmatmul.mubr.f32.gmra.mrb[0].mxu0 %v682
    %v821 = vpop.f32.mrb[0].mxu0
    %v822 = vadd.f32 0.0, %v821
    %v823 = vpop.f32.mrb[0].mxu0
    %824 = vdwg.mxu0
    %v826 = vrot.slane %v751, 6
    %v827 = vrot.slane %v751, 7
    %v830 = vadd.f32 %v149, %v826
    %v831 = vadd.f32 %v155, %v827
    %v832 = vmul.f32 %v830, 0.5
    %v833 = vmul.f32 %v831, 0.5
    %v834 = vtanh.pop %v832
    %v835 = vtanh.pop %v833
    %v836 = vmul.f32 %v834, 0.5
    %v837 = vmul.f32 %v835, 0.5
    %v838 = vadd.f32 %v836, 0.5
    %v839 = vadd.f32 %v837, 0.5
    %v841 = vrot.slane %v753, 6
    %v842 = vrot.slane %v753, 7
    %v845 = vadd.f32 %v151, %v841
    %v846 = vadd.f32 %v157, %v842
    %v847 = vmul.f32 %v845, 0.5
    %v848 = vmul.f32 %v846, 0.5
    %v849 = vtanh.pop %v847
    %v850 = vtanh.pop %v848
    %v851 = vmul.f32 %v849, 0.5
    %v852 = vmul.f32 %v850, 0.5
    %v853 = vadd.f32 %v851, 0.5
    %v854 = vadd.f32 %v852, 0.5
    %v855 = vadd.f32 %v822, %v457
    %v857 = vrot.slane %v855, 6
    %v858 = vrot.slane %v855, 7
    %v861 = vmul.f32 %v838, %v857
    %v862 = vmul.f32 %v839, %v858
    %v863 = vadd.f32 %v226, %v861
    %v864 = vadd.f32 %v231, %v862
    %v865 = vtanh.pop %v863
    %v866 = vtanh.pop %v864
    %v867 = vsub.f32 1.0, %v853
    %v868 = vsub.f32 1.0, %v854
    %v869 = vmul.f32 %v867, %v865
    %v870 = vmul.f32 %v868, %v866
    %v871 = vrot.slane %v677, 7
    %v872 = vrot.slane %v678, 7
    %v875 = vmul.f32 %v853, %v871
    %v876 = vmul.f32 %v854, %v872
    %v877 = vadd.f32 %v869, %v875
    %v878 = vadd.f32 %v870, %v876
    %v881 = vrot.slane %v877, 2
    %v882 = vrot.slane %v878, 1
    %v883 = vsel %vm485, %v882, %v881
    %885 = vmatprep.subr.mxu0 %v235
    %886 = vmatpush1.msra.mxu0 %v234
    %887 = vmatprep.subr.mxu0 %v238
    %888 = vmatpush1.msra.mxu0 %v237
    %889 = vmatprep.subr.mxu0 %v241
    %890 = vmatpush1.msra.mxu0 %v240
    %891 = vmatprep.subr.mxu0 %v244
    %892 = vmatpush1.msra.mxu0 %v243
    %893 = vmatprep.subr.mxu0 %v247
    %894 = vmatpush1.msra.mxu0 %v246
    %895 = vmatprep.subr.mxu0 %v250
    %896 = vmatpush1.msra.mxu0 %v249
    %897 = vmatprep.subr.mxu0 %v253
    %898 = vmatpush1.msra.mxu0 %v252
    %899 = vmatprep.subr.mxu0 %v256
    %900 = vmatpush1.msra.mxu0 %v255
    %901 = vmatprep.subr.mxu0 %v259
    %902 = vmatpush1.msra.mxu0 %v258
    %903 = vmatprep.subr.mxu0 %v262
    %904 = vmatpush1.msra.mxu0 %v261
    %905 = vmatprep.subr.mxu0 %v265
    %906 = vmatpush1.msra.mxu0 %v264
    %907 = vmatprep.subr.mxu0 %v268
    %908 = vmatpush1.msra.mxu0 %v267
    %909 = vmatprep.subr.mxu0 %v271
    %910 = vmatpush1.msra.mxu0 %v270
    %911 = vmatprep.subr.mxu0 %v274
    %912 = vmatpush1.msra.mxu0 %v273
    %913 = vmatprep.subr.mxu0 %v277
    %914 = vmatpush1.msra.mxu0 %v276
    %915 = vmatprep.subr.mxu0 %v280
    %916 = vmatpush1.msra.mxu0 %v279
    %917 = vmatprep.subr.mxu0 0.0
    %918 = vmatpush1.msra.mxu0 0.0
    %919 = vmatprep.subr.mxu0 0.0
    %920 = vmatpush1.msra.mxu0 0.0
    %921 = vmatprep.subr.mxu0 0.0
    %922 = vmatpush1.msra.mxu0 0.0
    %923 = vmatprep.subr.mxu0 0.0
    %924 = vmatpush1.msra.mxu0 0.0
    %925 = vmatprep.subr.mxu0 0.0
    %926 = vmatpush1.msra.mxu0 0.0
    %927 = vmatprep.subr.mxu0 0.0
    %928 = vmatpush1.msra.mxu0 0.0
    %929 = vmatprep.subr.mxu0 0.0
    %930 = vmatpush1.msra.mxu0 0.0
    %931 = vmatprep.subr.mxu0 0.0
    %932 = vmatpush1.msra.mxu0 0.0
    %933 = vmatprep.subr.mxu0 0.0
    %934 = vmatpush1.msra.mxu0 0.0
    %935 = vmatprep.subr.mxu0 0.0
    %936 = vmatpush1.msra.mxu0 0.0
    %937 = vmatprep.subr.mxu0 0.0
    %938 = vmatpush1.msra.mxu0 0.0
    %939 = vmatprep.subr.mxu0 0.0
    %940 = vmatpush1.msra.mxu0 0.0
    %941 = vmatprep.subr.mxu0 0.0
    %942 = vmatpush1.msra.mxu0 0.0
    %943 = vmatprep.subr.mxu0 0.0
    %944 = vmatpush1.msra.mxu0 0.0
    %945 = vmatprep.subr.mxu0 0.0
    %946 = vmatpush1.msra.mxu0 0.0
    %947 = vmatprep.subr.mxu0 0.0
    %948 = vmatpush1.msra.mxu0 0.0
    %949 = vmatprep.mubr.f32.mxu0 0.0
    %950 = vmatmul.mubr.f32.gmra.mrb[0].mxu0 %v883
    %v951 = vpop.f32.mrb[0].mxu0
    %v952 = vadd.f32 0.0, %v951
    %v953 = vpop.f32.mrb[0].mxu0
    %v954 = vadd.f32 0.0, %v953
    %955 = vdwg.mxu0
    %956 = vmatprep.subr.mxu0 0.0
    %957 = vmatpush1.msra.mxu0 %v236
    %958 = vmatprep.subr.mxu0 0.0
    %959 = vmatpush1.msra.mxu0 %v239
    %960 = vmatprep.subr.mxu0 0.0
    %961 = vmatpush1.msra.mxu0 %v242
    %962 = vmatprep.subr.mxu0 0.0
    %963 = vmatpush1.msra.mxu0 %v245
    %964 = vmatprep.subr.mxu0 0.0
    %965 = vmatpush1.msra.mxu0 %v248
    %966 = vmatprep.subr.mxu0 0.0
    %967 = vmatpush1.msra.mxu0 %v251
    %968 = vmatprep.subr.mxu0 0.0
    %969 = vmatpush1.msra.mxu0 %v254
    %970 = vmatprep.subr.mxu0 0.0
    %971 = vmatpush1.msra.mxu0 %v257
    %972 = vmatprep.subr.mxu0 0.0
    %973 = vmatpush1.msra.mxu0 %v260
    %974 = vmatprep.subr.mxu0 0.0
    %975 = vmatpush1.msra.mxu0 %v263
    %976 = vmatprep.subr.mxu0 0.0
    %977 = vmatpush1.msra.mxu0 %v266
    %978 = vmatprep.subr.mxu0 0.0
    %979 = vmatpush1.msra.mxu0 %v269
    %980 = vmatprep.subr.mxu0 0.0
    %981 = vmatpush1.msra.mxu0 %v272
    %982 = vmatprep.subr.mxu0 0.0
    %983 = vmatpush1.msra.mxu0 %v275
    %984 = vmatprep.subr.mxu0 0.0
    %985 = vmatpush1.msra.mxu0 %v278
    %986 = vmatprep.subr.mxu0 0.0
    %987 = vmatpush1.msra.mxu0 %v281
    %988 = vmatprep.subr.mxu0 0.0
    %989 = vmatpush1.msra.mxu0 0.0
    %990 = vmatprep.subr.mxu0 0.0
    %991 = vmatpush1.msra.mxu0 0.0
    %992 = vmatprep.subr.mxu0 0.0
    %993 = vmatpush1.msra.mxu0 0.0
    %994 = vmatprep.subr.mxu0 0.0
    %995 = vmatpush1.msra.mxu0 0.0
    %996 = vmatprep.subr.mxu0 0.0
    %997 = vmatpush1.msra.mxu0 0.0
    %998 = vmatprep.subr.mxu0 0.0
    %999 = vmatpush1.msra.mxu0 0.0
    %1000 = vmatprep.subr.mxu0 0.0
    %1001 = vmatpush1.msra.mxu0 0.0
    %1002 = vmatprep.subr.mxu0 0.0
    %1003 = vmatpush1.msra.mxu0 0.0
    %1004 = vmatprep.subr.mxu0 0.0
    %1005 = vmatpush1.msra.mxu0 0.0
    %1006 = vmatprep.subr.mxu0 0.0
    %1007 = vmatpush1.msra.mxu0 0.0
    %1008 = vmatprep.subr.mxu0 0.0
    %1009 = vmatpush1.msra.mxu0 0.0
    %1010 = vmatprep.subr.mxu0 0.0
    %1011 = vmatpush1.msra.mxu0 0.0
    %1012 = vmatprep.subr.mxu0 0.0
    %1013 = vmatpush1.msra.mxu0 0.0
    %1014 = vmatprep.subr.mxu0 0.0
    %1015 = vmatpush1.msra.mxu0 0.0
    %1016 = vmatprep.subr.mxu0 0.0
    %1017 = vmatpush1.msra.mxu0 0.0
    %1018 = vmatprep.subr.mxu0 0.0
    %1019 = vmatpush1.msra.mxu0 0.0
    %1020 = vmatprep.mubr.f32.mxu0 0.0
    %1021 = vmatmul.mubr.f32.gmra.mrb[0].mxu0 %v883
    %v1022 = vpop.f32.mrb[0].mxu0
    %v1023 = vadd.f32 0.0, %v1022
    %v1024 = vpop.f32.mrb[0].mxu0
    %1025 = vdwg.mxu0
    %v1027 = vrot.slane %v952, 5
    %v1028 = vrot.slane %v952, 6
    %v1031 = vadd.f32 %v149, %v1027
    %v1032 = vadd.f32 %v155, %v1028
    %v1033 = vmul.f32 %v1031, 0.5
    %v1034 = vmul.f32 %v1032, 0.5
    %v1035 = vtanh.pop %v1033
    %v1036 = vtanh.pop %v1034
    %v1037 = vmul.f32 %v1035, 0.5
    %v1038 = vmul.f32 %v1036, 0.5
    %v1039 = vadd.f32 %v1037, 0.5
    %v1040 = vadd.f32 %v1038, 0.5
    %v1042 = vrot.slane %v954, 5
    %v1043 = vrot.slane %v954, 6
    %v1046 = vadd.f32 %v151, %v1042
    %v1047 = vadd.f32 %v157, %v1043
    %v1048 = vmul.f32 %v1046, 0.5
    %v1049 = vmul.f32 %v1047, 0.5
    %v1050 = vtanh.pop %v1048
    %v1051 = vtanh.pop %v1049
    %v1052 = vmul.f32 %v1050, 0.5
    %v1053 = vmul.f32 %v1051, 0.5
    %v1054 = vadd.f32 %v1052, 0.5
    %v1055 = vadd.f32 %v1053, 0.5
    %v1056 = vadd.f32 %v1023, %v457
    %v1058 = vrot.slane %v1056, 5
    %v1059 = vrot.slane %v1056, 6
    %v1062 = vmul.f32 %v1039, %v1058
    %v1063 = vmul.f32 %v1040, %v1059
    %v1064 = vadd.f32 %v226, %v1062
    %v1065 = vadd.f32 %v231, %v1063
    %v1066 = vtanh.pop %v1064
    %v1067 = vtanh.pop %v1065
    %v1068 = vsub.f32 1.0, %v1054
    %v1069 = vsub.f32 1.0, %v1055
    %v1070 = vmul.f32 %v1068, %v1066
    %v1071 = vmul.f32 %v1069, %v1067
    %v1072 = vrot.slane %v877, 7
    %v1073 = vrot.slane %v878, 7
    %v1076 = vmul.f32 %v1054, %v1072
    %v1077 = vmul.f32 %v1055, %v1073
    %v1078 = vadd.f32 %v1070, %v1076
    %v1079 = vadd.f32 %v1071, %v1077
    %v1082 = vrot.slane %v1078, 3
    %v1083 = vrot.slane %v1079, 2
    %v1084 = vsel %vm485, %v1083, %v1082
    %1086 = vmatprep.subr.mxu0 %v235
    %1087 = vmatpush1.msra.mxu0 %v234
    %1088 = vmatprep.subr.mxu0 %v238
    %1089 = vmatpush1.msra.mxu0 %v237
    %1090 = vmatprep.subr.mxu0 %v241
    %1091 = vmatpush1.msra.mxu0 %v240
    %1092 = vmatprep.subr.mxu0 %v244
    %1093 = vmatpush1.msra.mxu0 %v243
    %1094 = vmatprep.subr.mxu0 %v247
    %1095 = vmatpush1.msra.mxu0 %v246
    %1096 = vmatprep.subr.mxu0 %v250
    %1097 = vmatpush1.msra.mxu0 %v249
    %1098 = vmatprep.subr.mxu0 %v253
    %1099 = vmatpush1.msra.mxu0 %v252
    %1100 = vmatprep.subr.mxu0 %v256
    %1101 = vmatpush1.msra.mxu0 %v255
    %1102 = vmatprep.subr.mxu0 %v259
    %1103 = vmatpush1.msra.mxu0 %v258
    %1104 = vmatprep.subr.mxu0 %v262
    %1105 = vmatpush1.msra.mxu0 %v261
    %1106 = vmatprep.subr.mxu0 %v265
    %1107 = vmatpush1.msra.mxu0 %v264
    %1108 = vmatprep.subr.mxu0 %v268
    %1109 = vmatpush1.msra.mxu0 %v267
    %1110 = vmatprep.subr.mxu0 %v271
    %1111 = vmatpush1.msra.mxu0 %v270
    %1112 = vmatprep.subr.mxu0 %v274
    %1113 = vmatpush1.msra.mxu0 %v273
    %1114 = vmatprep.subr.mxu0 %v277
    %1115 = vmatpush1.msra.mxu0 %v276
    %1116 = vmatprep.subr.mxu0 %v280
    %1117 = vmatpush1.msra.mxu0 %v279
    %1118 = vmatprep.subr.mxu0 0.0
    %1119 = vmatpush1.msra.mxu0 0.0
    %1120 = vmatprep.subr.mxu0 0.0
    %1121 = vmatpush1.msra.mxu0 0.0
    %1122 = vmatprep.subr.mxu0 0.0
    %1123 = vmatpush1.msra.mxu0 0.0
    %1124 = vmatprep.subr.mxu0 0.0
    %1125 = vmatpush1.msra.mxu0 0.0
    %1126 = vmatprep.subr.mxu0 0.0
    %1127 = vmatpush1.msra.mxu0 0.0
    %1128 = vmatprep.subr.mxu0 0.0
    %1129 = vmatpush1.msra.mxu0 0.0
    %1130 = vmatprep.subr.mxu0 0.0
    %1131 = vmatpush1.msra.mxu0 0.0
    %1132 = vmatprep.subr.mxu0 0.0
    %1133 = vmatpush1.msra.mxu0 0.0
    %1134 = vmatprep.subr.mxu0 0.0
    %1135 = vmatpush1.msra.mxu0 0.0
    %1136 = vmatprep.subr.mxu0 0.0
    %1137 = vmatpush1.msra.mxu0 0.0
    %1138 = vmatprep.subr.mxu0 0.0
    %1139 = vmatpush1.msra.mxu0 0.0
    %1140 = vmatprep.subr.mxu0 0.0
    %1141 = vmatpush1.msra.mxu0 0.0
    %1142 = vmatprep.subr.mxu0 0.0
    %1143 = vmatpush1.msra.mxu0 0.0
    %1144 = vmatprep.subr.mxu0 0.0
    %1145 = vmatpush1.msra.mxu0 0.0
    %1146 = vmatprep.subr.mxu0 0.0
    %1147 = vmatpush1.msra.mxu0 0.0
    %1148 = vmatprep.subr.mxu0 0.0
    %1149 = vmatpush1.msra.mxu0 0.0
    %1150 = vmatprep.mubr.f32.mxu0 0.0
    %1151 = vmatmul.mubr.f32.gmra.mrb[0].mxu0 %v1084
    %v1152 = vpop.f32.mrb[0].mxu0
    %v1153 = vadd.f32 0.0, %v1152
    %v1154 = vpop.f32.mrb[0].mxu0
    %v1155 = vadd.f32 0.0, %v1154
    %1156 = vdwg.mxu0
    %1157 = vmatprep.subr.mxu0 0.0
    %1158 = vmatpush1.msra.mxu0 %v236
    %1159 = vmatprep.subr.mxu0 0.0
    %1160 = vmatpush1.msra.mxu0 %v239
    %1161 = vmatprep.subr.mxu0 0.0
    %1162 = vmatpush1.msra.mxu0 %v242
    %1163 = vmatprep.subr.mxu0 0.0
    %1164 = vmatpush1.msra.mxu0 %v245
    %1165 = vmatprep.subr.mxu0 0.0
    %1166 = vmatpush1.msra.mxu0 %v248
    %1167 = vmatprep.subr.mxu0 0.0
    %1168 = vmatpush1.msra.mxu0 %v251
    %1169 = vmatprep.subr.mxu0 0.0
    %1170 = vmatpush1.msra.mxu0 %v254
    %1171 = vmatprep.subr.mxu0 0.0
    %1172 = vmatpush1.msra.mxu0 %v257
    %1173 = vmatprep.subr.mxu0 0.0
    %1174 = vmatpush1.msra.mxu0 %v260
    %1175 = vmatprep.subr.mxu0 0.0
    %1176 = vmatpush1.msra.mxu0 %v263
    %1177 = vmatprep.subr.mxu0 0.0
    %1178 = vmatpush1.msra.mxu0 %v266
    %1179 = vmatprep.subr.mxu0 0.0
    %1180 = vmatpush1.msra.mxu0 %v269
    %1181 = vmatprep.subr.mxu0 0.0
    %1182 = vmatpush1.msra.mxu0 %v272
    %1183 = vmatprep.subr.mxu0 0.0
    %1184 = vmatpush1.msra.mxu0 %v275
    %1185 = vmatprep.subr.mxu0 0.0
    %1186 = vmatpush1.msra.mxu0 %v278
    %1187 = vmatprep.subr.mxu0 0.0
    %1188 = vmatpush1.msra.mxu0 %v281
    %1189 = vmatprep.subr.mxu0 0.0
    %1190 = vmatpush1.msra.mxu0 0.0
    %1191 = vmatprep.subr.mxu0 0.0
    %1192 = vmatpush1.msra.mxu0 0.0
    %1193 = vmatprep.subr.mxu0 0.0
    %1194 = vmatpush1.msra.mxu0 0.0
    %1195 = vmatprep.subr.mxu0 0.0
    %1196 = vmatpush1.msra.mxu0 0.0
    %1197 = vmatprep.subr.mxu0 0.0
    %1198 = vmatpush1.msra.mxu0 0.0
    %1199 = vmatprep.subr.mxu0 0.0
    %1200 = vmatpush1.msra.mxu0 0.0
    %1201 = vmatprep.subr.mxu0 0.0
    %1202 = vmatpush1.msra.mxu0 0.0
    %1203 = vmatprep.subr.mxu0 0.0
    %1204 = vmatpush1.msra.mxu0 0.0
    %1205 = vmatprep.subr.mxu0 0.0
    %1206 = vmatpush1.msra.mxu0 0.0
    %1207 = vmatprep.subr.mxu0 0.0
    %1208 = vmatpush1.msra.mxu0 0.0
    %1209 = vmatprep.subr.mxu0 0.0
    %1210 = vmatpush1.msra.mxu0 0.0
    %1211 = vmatprep.subr.mxu0 0.0
    %1212 = vmatpush1.msra.mxu0 0.0
    %1213 = vmatprep.subr.mxu0 0.0
    %1214 = vmatpush1.msra.mxu0 0.0
    %1215 = vmatprep.subr.mxu0 0.0
    %1216 = vmatpush1.msra.mxu0 0.0
    %1217 = vmatprep.subr.mxu0 0.0
    %1218 = vmatpush1.msra.mxu0 0.0
    %1219 = vmatprep.subr.mxu0 0.0
    %1220 = vmatpush1.msra.mxu0 0.0
    %1221 = vmatprep.mubr.f32.mxu0 0.0
    %1222 = vmatmul.mubr.f32.gmra.mrb[0].mxu0 %v1084
    %v1223 = vpop.f32.mrb[0].mxu0
    %v1224 = vadd.f32 0.0, %v1223
    %v1225 = vpop.f32.mrb[0].mxu0
    %1226 = vdwg.mxu0
    %v1228 = vrot.slane %v1153, 4
    %v1229 = vrot.slane %v1153, 5
    %v1232 = vadd.f32 %v149, %v1228
    %v1233 = vadd.f32 %v155, %v1229
    %v1234 = vmul.f32 %v1232, 0.5
    %v1235 = vmul.f32 %v1233, 0.5
    %v1236 = vtanh.pop %v1234
    %v1237 = vtanh.pop %v1235
    %v1238 = vmul.f32 %v1236, 0.5
    %v1239 = vmul.f32 %v1237, 0.5
    %v1240 = vadd.f32 %v1238, 0.5
    %v1241 = vadd.f32 %v1239, 0.5
    %v1243 = vrot.slane %v1155, 4
    %v1244 = vrot.slane %v1155, 5
    %v1247 = vadd.f32 %v151, %v1243
    %v1248 = vadd.f32 %v157, %v1244
    %v1249 = vmul.f32 %v1247, 0.5
    %v1250 = vmul.f32 %v1248, 0.5
    %v1251 = vtanh.pop %v1249
    %v1252 = vtanh.pop %v1250
    %v1253 = vmul.f32 %v1251, 0.5
    %v1254 = vmul.f32 %v1252, 0.5
    %v1255 = vadd.f32 %v1253, 0.5
    %v1256 = vadd.f32 %v1254, 0.5
    %v1257 = vadd.f32 %v1224, %v457
    %v1259 = vrot.slane %v1257, 4
    %v1260 = vrot.slane %v1257, 5
    %v1263 = vmul.f32 %v1240, %v1259
    %v1264 = vmul.f32 %v1241, %v1260
    %v1265 = vadd.f32 %v226, %v1263
    %v1266 = vadd.f32 %v231, %v1264
    %v1267 = vtanh.pop %v1265
    %v1268 = vtanh.pop %v1266
    %v1269 = vsub.f32 1.0, %v1255
    %v1270 = vsub.f32 1.0, %v1256
    %v1271 = vmul.f32 %v1269, %v1267
    %v1272 = vmul.f32 %v1270, %v1268
    %v1273 = vrot.slane %v1078, 7
    %v1274 = vrot.slane %v1079, 7
    %v1277 = vmul.f32 %v1255, %v1273
    %v1278 = vmul.f32 %v1256, %v1274
    %v1279 = vadd.f32 %v1271, %v1277
    %v1280 = vadd.f32 %v1272, %v1278
    %v1283 = vrot.slane %v1279, 4
    %v1284 = vrot.slane %v1280, 3
    %v1285 = vsel %vm485, %v1284, %v1283
    %1287 = vmatprep.subr.mxu0 %v235
    %1288 = vmatpush1.msra.mxu0 %v234
    %1289 = vmatprep.subr.mxu0 %v238
    %1290 = vmatpush1.msra.mxu0 %v237
    %1291 = vmatprep.subr.mxu0 %v241
    %1292 = vmatpush1.msra.mxu0 %v240
    %1293 = vmatprep.subr.mxu0 %v244
    %1294 = vmatpush1.msra.mxu0 %v243
    %1295 = vmatprep.subr.mxu0 %v247
    %1296 = vmatpush1.msra.mxu0 %v246
    %1297 = vmatprep.subr.mxu0 %v250
    %1298 = vmatpush1.msra.mxu0 %v249
    %1299 = vmatprep.subr.mxu0 %v253
    %1300 = vmatpush1.msra.mxu0 %v252
    %1301 = vmatprep.subr.mxu0 %v256
    %1302 = vmatpush1.msra.mxu0 %v255
    %1303 = vmatprep.subr.mxu0 %v259
    %1304 = vmatpush1.msra.mxu0 %v258
    %1305 = vmatprep.subr.mxu0 %v262
    %1306 = vmatpush1.msra.mxu0 %v261
    %1307 = vmatprep.subr.mxu0 %v265
    %1308 = vmatpush1.msra.mxu0 %v264
    %1309 = vmatprep.subr.mxu0 %v268
    %1310 = vmatpush1.msra.mxu0 %v267
    %1311 = vmatprep.subr.mxu0 %v271
    %1312 = vmatpush1.msra.mxu0 %v270
    %1313 = vmatprep.subr.mxu0 %v274
    %1314 = vmatpush1.msra.mxu0 %v273
    %1315 = vmatprep.subr.mxu0 %v277
    %1316 = vmatpush1.msra.mxu0 %v276
    %1317 = vmatprep.subr.mxu0 %v280
    %1318 = vmatpush1.msra.mxu0 %v279
    %1319 = vmatprep.subr.mxu0 0.0
    %1320 = vmatpush1.msra.mxu0 0.0
    %1321 = vmatprep.subr.mxu0 0.0
    %1322 = vmatpush1.msra.mxu0 0.0
    %1323 = vmatprep.subr.mxu0 0.0
    %1324 = vmatpush1.msra.mxu0 0.0
    %1325 = vmatprep.subr.mxu0 0.0
    %1326 = vmatpush1.msra.mxu0 0.0
    %1327 = vmatprep.subr.mxu0 0.0
    %1328 = vmatpush1.msra.mxu0 0.0
    %1329 = vmatprep.subr.mxu0 0.0
    %1330 = vmatpush1.msra.mxu0 0.0
    %1331 = vmatprep.subr.mxu0 0.0
    %1332 = vmatpush1.msra.mxu0 0.0
    %1333 = vmatprep.subr.mxu0 0.0
    %1334 = vmatpush1.msra.mxu0 0.0
    %1335 = vmatprep.subr.mxu0 0.0
    %1336 = vmatpush1.msra.mxu0 0.0
    %1337 = vmatprep.subr.mxu0 0.0
    %1338 = vmatpush1.msra.mxu0 0.0
    %1339 = vmatprep.subr.mxu0 0.0
    %1340 = vmatpush1.msra.mxu0 0.0
    %1341 = vmatprep.subr.mxu0 0.0
    %1342 = vmatpush1.msra.mxu0 0.0
    %1343 = vmatprep.subr.mxu0 0.0
    %1344 = vmatpush1.msra.mxu0 0.0
    %1345 = vmatprep.subr.mxu0 0.0
    %1346 = vmatpush1.msra.mxu0 0.0
    %1347 = vmatprep.subr.mxu0 0.0
    %1348 = vmatpush1.msra.mxu0 0.0
    %1349 = vmatprep.subr.mxu0 0.0
    %1350 = vmatpush1.msra.mxu0 0.0
    %1351 = vmatprep.mubr.f32.mxu0 0.0
    %1352 = vmatmul.mubr.f32.gmra.mrb[0].mxu0 %v1285
    %v1353 = vpop.f32.mrb[0].mxu0
    %v1354 = vadd.f32 0.0, %v1353
    %v1355 = vpop.f32.mrb[0].mxu0
    %v1356 = vadd.f32 0.0, %v1355
    %1357 = vdwg.mxu0
    %1358 = vmatprep.subr.mxu0 0.0
    %1359 = vmatpush1.msra.mxu0 %v236
    %1360 = vmatprep.subr.mxu0 0.0
    %1361 = vmatpush1.msra.mxu0 %v239
    %1362 = vmatprep.subr.mxu0 0.0
    %1363 = vmatpush1.msra.mxu0 %v242
    %1364 = vmatprep.subr.mxu0 0.0
    %1365 = vmatpush1.msra.mxu0 %v245
    %1366 = vmatprep.subr.mxu0 0.0
    %1367 = vmatpush1.msra.mxu0 %v248
    %1368 = vmatprep.subr.mxu0 0.0
    %1369 = vmatpush1.msra.mxu0 %v251
    %1370 = vmatprep.subr.mxu0 0.0
    %1371 = vmatpush1.msra.mxu0 %v254
    %1372 = vmatprep.subr.mxu0 0.0
    %1373 = vmatpush1.msra.mxu0 %v257
    %1374 = vmatprep.subr.mxu0 0.0
    %1375 = vmatpush1.msra.mxu0 %v260
    %1376 = vmatprep.subr.mxu0 0.0
    %1377 = vmatpush1.msra.mxu0 %v263
    %1378 = vmatprep.subr.mxu0 0.0
    %1379 = vmatpush1.msra.mxu0 %v266
    %1380 = vmatprep.subr.mxu0 0.0
    %1381 = vmatpush1.msra.mxu0 %v269
    %1382 = vmatprep.subr.mxu0 0.0
    %1383 = vmatpush1.msra.mxu0 %v272
    %1384 = vmatprep.subr.mxu0 0.0
    %1385 = vmatpush1.msra.mxu0 %v275
    %1386 = vmatprep.subr.mxu0 0.0
    %1387 = vmatpush1.msra.mxu0 %v278
    %1388 = vmatprep.subr.mxu0 0.0
    %1389 = vmatpush1.msra.mxu0 %v281
    %1390 = vmatprep.subr.mxu0 0.0
    %1391 = vmatpush1.msra.mxu0 0.0
    %1392 = vmatprep.subr.mxu0 0.0
    %1393 = vmatpush1.msra.mxu0 0.0
    %1394 = vmatprep.subr.mxu0 0.0
    %1395 = vmatpush1.msra.mxu0 0.0
    %1396 = vmatprep.subr.mxu0 0.0
    %1397 = vmatpush1.msra.mxu0 0.0
    %1398 = vmatprep.subr.mxu0 0.0
    %1399 = vmatpush1.msra.mxu0 0.0
    %1400 = vmatprep.subr.mxu0 0.0
    %1401 = vmatpush1.msra.mxu0 0.0
    %1402 = vmatprep.subr.mxu0 0.0
    %1403 = vmatpush1.msra.mxu0 0.0
    %1404 = vmatprep.subr.mxu0 0.0
    %1405 = vmatpush1.msra.mxu0 0.0
    %1406 = vmatprep.subr.mxu0 0.0
    %1407 = vmatpush1.msra.mxu0 0.0
    %1408 = vmatprep.subr.mxu0 0.0
    %1409 = vmatpush1.msra.mxu0 0.0
    %1410 = vmatprep.subr.mxu0 0.0
    %1411 = vmatpush1.msra.mxu0 0.0
    %1412 = vmatprep.subr.mxu0 0.0
    %1413 = vmatpush1.msra.mxu0 0.0
    %1414 = vmatprep.subr.mxu0 0.0
    %1415 = vmatpush1.msra.mxu0 0.0
    %1416 = vmatprep.subr.mxu0 0.0
    %1417 = vmatpush1.msra.mxu0 0.0
    %1418 = vmatprep.subr.mxu0 0.0
    %1419 = vmatpush1.msra.mxu0 0.0
    %1420 = vmatprep.subr.mxu0 0.0
    %1421 = vmatpush1.msra.mxu0 0.0
    %1422 = vmatprep.mubr.f32.mxu0 0.0
    %1423 = vmatmul.mubr.f32.gmra.mrb[0].mxu0 %v1285
    %v1424 = vpop.f32.mrb[0].mxu0
    %v1425 = vadd.f32 0.0, %v1424
    %v1426 = vpop.f32.mrb[0].mxu0
    %1427 = vdwg.mxu0
    %v1429 = vrot.slane %v1354, 3
    %v1430 = vrot.slane %v1354, 4
    %v1433 = vadd.f32 %v149, %v1429
    %v1434 = vadd.f32 %v155, %v1430
    %v1435 = vmul.f32 %v1433, 0.5
    %v1436 = vmul.f32 %v1434, 0.5
    %v1437 = vtanh.pop %v1435
    %v1438 = vtanh.pop %v1436
    %v1439 = vmul.f32 %v1437, 0.5
    %v1440 = vmul.f32 %v1438, 0.5
    %v1441 = vadd.f32 %v1439, 0.5
    %v1442 = vadd.f32 %v1440, 0.5
    %v1444 = vrot.slane %v1356, 3
    %v1445 = vrot.slane %v1356, 4
    %v1448 = vadd.f32 %v151, %v1444
    %v1449 = vadd.f32 %v157, %v1445
    %v1450 = vmul.f32 %v1448, 0.5
    %v1451 = vmul.f32 %v1449, 0.5
    %v1452 = vtanh.pop %v1450
    %v1453 = vtanh.pop %v1451
    %v1454 = vmul.f32 %v1452, 0.5
    %v1455 = vmul.f32 %v1453, 0.5
    %v1456 = vadd.f32 %v1454, 0.5
    %v1457 = vadd.f32 %v1455, 0.5
    %v1458 = vadd.f32 %v1425, %v457
    %v1460 = vrot.slane %v1458, 3
    %v1461 = vrot.slane %v1458, 4
    %v1464 = vmul.f32 %v1441, %v1460
    %v1465 = vmul.f32 %v1442, %v1461
    %v1466 = vadd.f32 %v226, %v1464
    %v1467 = vadd.f32 %v231, %v1465
    %v1468 = vtanh.pop %v1466
    %v1469 = vtanh.pop %v1467
    %v1470 = vsub.f32 1.0, %v1456
    %v1471 = vsub.f32 1.0, %v1457
    %v1472 = vmul.f32 %v1470, %v1468
    %v1473 = vmul.f32 %v1471, %v1469
    %v1474 = vrot.slane %v1279, 7
    %v1475 = vrot.slane %v1280, 7
    %v1478 = vmul.f32 %v1456, %v1474
    %v1479 = vmul.f32 %v1457, %v1475
    %v1480 = vadd.f32 %v1472, %v1478
    %v1481 = vadd.f32 %v1473, %v1479
    %v1484 = vrot.slane %v1480, 5
    %v1485 = vrot.slane %v1481, 4
    %v1486 = vsel %vm485, %v1485, %v1484
    %1488 = vmatprep.subr.mxu0 %v235
    %1489 = vmatpush1.msra.mxu0 %v234
    %1490 = vmatprep.subr.mxu0 %v238
    %1491 = vmatpush1.msra.mxu0 %v237
    %1492 = vmatprep.subr.mxu0 %v241
    %1493 = vmatpush1.msra.mxu0 %v240
    %1494 = vmatprep.subr.mxu0 %v244
    %1495 = vmatpush1.msra.mxu0 %v243
    %1496 = vmatprep.subr.mxu0 %v247
    %1497 = vmatpush1.msra.mxu0 %v246
    %1498 = vmatprep.subr.mxu0 %v250
    %1499 = vmatpush1.msra.mxu0 %v249
    %1500 = vmatprep.subr.mxu0 %v253
    %1501 = vmatpush1.msra.mxu0 %v252
    %1502 = vmatprep.subr.mxu0 %v256
    %1503 = vmatpush1.msra.mxu0 %v255
    %1504 = vmatprep.subr.mxu0 %v259
    %1505 = vmatpush1.msra.mxu0 %v258
    %1506 = vmatprep.subr.mxu0 %v262
    %1507 = vmatpush1.msra.mxu0 %v261
    %1508 = vmatprep.subr.mxu0 %v265
    %1509 = vmatpush1.msra.mxu0 %v264
    %1510 = vmatprep.subr.mxu0 %v268
    %1511 = vmatpush1.msra.mxu0 %v267
    %1512 = vmatprep.subr.mxu0 %v271
    %1513 = vmatpush1.msra.mxu0 %v270
    %1514 = vmatprep.subr.mxu0 %v274
    %1515 = vmatpush1.msra.mxu0 %v273
    %1516 = vmatprep.subr.mxu0 %v277
    %1517 = vmatpush1.msra.mxu0 %v276
    %1518 = vmatprep.subr.mxu0 %v280
    %1519 = vmatpush1.msra.mxu0 %v279
    %1520 = vmatprep.subr.mxu0 0.0
    %1521 = vmatpush1.msra.mxu0 0.0
    %1522 = vmatprep.subr.mxu0 0.0
    %1523 = vmatpush1.msra.mxu0 0.0
    %1524 = vmatprep.subr.mxu0 0.0
    %1525 = vmatpush1.msra.mxu0 0.0
    %1526 = vmatprep.subr.mxu0 0.0
    %1527 = vmatpush1.msra.mxu0 0.0
    %1528 = vmatprep.subr.mxu0 0.0
    %1529 = vmatpush1.msra.mxu0 0.0
    %1530 = vmatprep.subr.mxu0 0.0
    %1531 = vmatpush1.msra.mxu0 0.0
    %1532 = vmatprep.subr.mxu0 0.0
    %1533 = vmatpush1.msra.mxu0 0.0
    %1534 = vmatprep.subr.mxu0 0.0
    %1535 = vmatpush1.msra.mxu0 0.0
    %1536 = vmatprep.subr.mxu0 0.0
    %1537 = vmatpush1.msra.mxu0 0.0
    %1538 = vmatprep.subr.mxu0 0.0
    %1539 = vmatpush1.msra.mxu0 0.0
    %1540 = vmatprep.subr.mxu0 0.0
    %1541 = vmatpush1.msra.mxu0 0.0
    %1542 = vmatprep.subr.mxu0 0.0
    %1543 = vmatpush1.msra.mxu0 0.0
    %1544 = vmatprep.subr.mxu0 0.0
    %1545 = vmatpush1.msra.mxu0 0.0
    %1546 = vmatprep.subr.mxu0 0.0
    %1547 = vmatpush1.msra.mxu0 0.0
    %1548 = vmatprep.subr.mxu0 0.0
    %1549 = vmatpush1.msra.mxu0 0.0
    %1550 = vmatprep.subr.mxu0 0.0
    %1551 = vmatpush1.msra.mxu0 0.0
    %1552 = vmatprep.mubr.f32.mxu0 0.0
    %1553 = vmatmul.mubr.f32.gmra.mrb[0].mxu0 %v1486
    %v1554 = vpop.f32.mrb[0].mxu0
    %v1555 = vadd.f32 0.0, %v1554
    %v1556 = vpop.f32.mrb[0].mxu0
    %v1557 = vadd.f32 0.0, %v1556
    %1558 = vdwg.mxu0
    %1559 = vmatprep.subr.mxu0 0.0
    %1560 = vmatpush1.msra.mxu0 %v236
    %1561 = vmatprep.subr.mxu0 0.0
    %1562 = vmatpush1.msra.mxu0 %v239
    %1563 = vmatprep.subr.mxu0 0.0
    %1564 = vmatpush1.msra.mxu0 %v242
    %1565 = vmatprep.subr.mxu0 0.0
    %1566 = vmatpush1.msra.mxu0 %v245
    %1567 = vmatprep.subr.mxu0 0.0
    %1568 = vmatpush1.msra.mxu0 %v248
    %1569 = vmatprep.subr.mxu0 0.0
    %1570 = vmatpush1.msra.mxu0 %v251
    %1571 = vmatprep.subr.mxu0 0.0
    %1572 = vmatpush1.msra.mxu0 %v254
    %1573 = vmatprep.subr.mxu0 0.0
    %1574 = vmatpush1.msra.mxu0 %v257
    %1575 = vmatprep.subr.mxu0 0.0
    %1576 = vmatpush1.msra.mxu0 %v260
    %1577 = vmatprep.subr.mxu0 0.0
    %1578 = vmatpush1.msra.mxu0 %v263
    %1579 = vmatprep.subr.mxu0 0.0
    %1580 = vmatpush1.msra.mxu0 %v266
    %1581 = vmatprep.subr.mxu0 0.0
    %1582 = vmatpush1.msra.mxu0 %v269
    %1583 = vmatprep.subr.mxu0 0.0
    %1584 = vmatpush1.msra.mxu0 %v272
    %1585 = vmatprep.subr.mxu0 0.0
    %1586 = vmatpush1.msra.mxu0 %v275
    %1587 = vmatprep.subr.mxu0 0.0
    %1588 = vmatpush1.msra.mxu0 %v278
    %1589 = vmatprep.subr.mxu0 0.0
    %1590 = vmatpush1.msra.mxu0 %v281
    %1591 = vmatprep.subr.mxu0 0.0
    %1592 = vmatpush1.msra.mxu0 0.0
    %1593 = vmatprep.subr.mxu0 0.0
    %1594 = vmatpush1.msra.mxu0 0.0
    %1595 = vmatprep.subr.mxu0 0.0
    %1596 = vmatpush1.msra.mxu0 0.0
    %1597 = vmatprep.subr.mxu0 0.0
    %1598 = vmatpush1.msra.mxu0 0.0
    %1599 = vmatprep.subr.mxu0 0.0
    %1600 = vmatpush1.msra.mxu0 0.0
    %1601 = vmatprep.subr.mxu0 0.0
    %1602 = vmatpush1.msra.mxu0 0.0
    %1603 = vmatprep.subr.mxu0 0.0
    %1604 = vmatpush1.msra.mxu0 0.0
    %1605 = vmatprep.subr.mxu0 0.0
    %1606 = vmatpush1.msra.mxu0 0.0
    %1607 = vmatprep.subr.mxu0 0.0
    %1608 = vmatpush1.msra.mxu0 0.0
    %1609 = vmatprep.subr.mxu0 0.0
    %1610 = vmatpush1.msra.mxu0 0.0
    %1611 = vmatprep.subr.mxu0 0.0
    %1612 = vmatpush1.msra.mxu0 0.0
    %1613 = vmatprep.subr.mxu0 0.0
    %1614 = vmatpush1.msra.mxu0 0.0
    %1615 = vmatprep.subr.mxu0 0.0
    %1616 = vmatpush1.msra.mxu0 0.0
    %1617 = vmatprep.subr.mxu0 0.0
    %1618 = vmatpush1.msra.mxu0 0.0
    %1619 = vmatprep.subr.mxu0 0.0
    %1620 = vmatpush1.msra.mxu0 0.0
    %1621 = vmatprep.subr.mxu0 0.0
    %1622 = vmatpush1.msra.mxu0 0.0
    %1623 = vmatprep.mubr.f32.mxu0 0.0
    %1624 = vmatmul.mubr.f32.gmra.mrb[0].mxu0 %v1486
    %v1625 = vpop.f32.mrb[0].mxu0
    %v1626 = vadd.f32 0.0, %v1625
    %v1627 = vpop.f32.mrb[0].mxu0
    %1628 = vdwg.mxu0
    %v1630 = vrot.slane %v1555, 2
    %v1631 = vrot.slane %v1555, 3
    %v1634 = vadd.f32 %v149, %v1630
    %v1635 = vadd.f32 %v155, %v1631
    %v1636 = vmul.f32 %v1634, 0.5
    %v1637 = vmul.f32 %v1635, 0.5
    %v1638 = vtanh.pop %v1636
    %v1639 = vtanh.pop %v1637
    %v1640 = vmul.f32 %v1638, 0.5
    %v1641 = vmul.f32 %v1639, 0.5
    %v1642 = vadd.f32 %v1640, 0.5
    %v1643 = vadd.f32 %v1641, 0.5
    %v1645 = vrot.slane %v1557, 2
    %v1646 = vrot.slane %v1557, 3
    %v1649 = vadd.f32 %v151, %v1645
    %v1650 = vadd.f32 %v157, %v1646
    %v1651 = vmul.f32 %v1649, 0.5
    %v1652 = vmul.f32 %v1650, 0.5
    %v1653 = vtanh.pop %v1651
    %v1654 = vtanh.pop %v1652
    %v1655 = vmul.f32 %v1653, 0.5
    %v1656 = vmul.f32 %v1654, 0.5
    %v1657 = vadd.f32 %v1655, 0.5
    %v1658 = vadd.f32 %v1656, 0.5
    %v1659 = vadd.f32 %v1626, %v457
    %v1661 = vrot.slane %v1659, 2
    %v1662 = vrot.slane %v1659, 3
    %v1665 = vmul.f32 %v1642, %v1661
    %v1666 = vmul.f32 %v1643, %v1662
    %v1667 = vadd.f32 %v226, %v1665
    %v1668 = vadd.f32 %v231, %v1666
    %v1669 = vtanh.pop %v1667
    %v1670 = vtanh.pop %v1668
    %v1671 = vsub.f32 1.0, %v1657
    %v1672 = vsub.f32 1.0, %v1658
    %v1673 = vmul.f32 %v1671, %v1669
    %v1674 = vmul.f32 %v1672, %v1670
    %v1675 = vrot.slane %v1480, 7
    %v1676 = vrot.slane %v1481, 7
    %v1679 = vmul.f32 %v1657, %v1675
    %v1680 = vmul.f32 %v1658, %v1676
    %v1681 = vadd.f32 %v1673, %v1679
    %v1682 = vadd.f32 %v1674, %v1680
    %v1685 = vrot.slane %v1681, 6
    %v1686 = vrot.slane %v1682, 5
    %v1687 = vsel %vm485, %v1686, %v1685
    %1689 = vmatprep.subr.mxu0 %v235
    %1690 = vmatpush1.msra.mxu0 %v234
    %1691 = vmatprep.subr.mxu0 %v238
    %1692 = vmatpush1.msra.mxu0 %v237
    %1693 = vmatprep.subr.mxu0 %v241
    %1694 = vmatpush1.msra.mxu0 %v240
    %1695 = vmatprep.subr.mxu0 %v244
    %1696 = vmatpush1.msra.mxu0 %v243
    %1697 = vmatprep.subr.mxu0 %v247
    %1698 = vmatpush1.msra.mxu0 %v246
    %1699 = vmatprep.subr.mxu0 %v250
    %1700 = vmatpush1.msra.mxu0 %v249
    %1701 = vmatprep.subr.mxu0 %v253
    %1702 = vmatpush1.msra.mxu0 %v252
    %1703 = vmatprep.subr.mxu0 %v256
    %1704 = vmatpush1.msra.mxu0 %v255
    %1705 = vmatprep.subr.mxu0 %v259
    %1706 = vmatpush1.msra.mxu0 %v258
    %1707 = vmatprep.subr.mxu0 %v262
    %1708 = vmatpush1.msra.mxu0 %v261
    %1709 = vmatprep.subr.mxu0 %v265
    %1710 = vmatpush1.msra.mxu0 %v264
    %1711 = vmatprep.subr.mxu0 %v268
    %1712 = vmatpush1.msra.mxu0 %v267
    %1713 = vmatprep.subr.mxu0 %v271
    %1714 = vmatpush1.msra.mxu0 %v270
    %1715 = vmatprep.subr.mxu0 %v274
    %1716 = vmatpush1.msra.mxu0 %v273
    %1717 = vmatprep.subr.mxu0 %v277
    %1718 = vmatpush1.msra.mxu0 %v276
    %1719 = vmatprep.subr.mxu0 %v280
    %1720 = vmatpush1.msra.mxu0 %v279
    %1721 = vmatprep.subr.mxu0 0.0
    %1722 = vmatpush1.msra.mxu0 0.0
    %1723 = vmatprep.subr.mxu0 0.0
    %1724 = vmatpush1.msra.mxu0 0.0
    %1725 = vmatprep.subr.mxu0 0.0
    %1726 = vmatpush1.msra.mxu0 0.0
    %1727 = vmatprep.subr.mxu0 0.0
    %1728 = vmatpush1.msra.mxu0 0.0
    %1729 = vmatprep.subr.mxu0 0.0
    %1730 = vmatpush1.msra.mxu0 0.0
    %1731 = vmatprep.subr.mxu0 0.0
    %1732 = vmatpush1.msra.mxu0 0.0
    %1733 = vmatprep.subr.mxu0 0.0
    %1734 = vmatpush1.msra.mxu0 0.0
    %1735 = vmatprep.subr.mxu0 0.0
    %1736 = vmatpush1.msra.mxu0 0.0
    %1737 = vmatprep.subr.mxu0 0.0
    %1738 = vmatpush1.msra.mxu0 0.0
    %1739 = vmatprep.subr.mxu0 0.0
    %1740 = vmatpush1.msra.mxu0 0.0
    %1741 = vmatprep.subr.mxu0 0.0
    %1742 = vmatpush1.msra.mxu0 0.0
    %1743 = vmatprep.subr.mxu0 0.0
    %1744 = vmatpush1.msra.mxu0 0.0
    %1745 = vmatprep.subr.mxu0 0.0
    %1746 = vmatpush1.msra.mxu0 0.0
    %1747 = vmatprep.subr.mxu0 0.0
    %1748 = vmatpush1.msra.mxu0 0.0
    %1749 = vmatprep.subr.mxu0 0.0
    %1750 = vmatpush1.msra.mxu0 0.0
    %1751 = vmatprep.subr.mxu0 0.0
    %1752 = vmatpush1.msra.mxu0 0.0
    %1753 = vmatprep.mubr.f32.mxu0 0.0
    %1754 = vmatmul.mubr.f32.gmra.mrb[0].mxu0 %v1687
    %v1755 = vpop.f32.mrb[0].mxu0
    %v1756 = vadd.f32 0.0, %v1755
    %v1757 = vpop.f32.mrb[0].mxu0
    %v1758 = vadd.f32 0.0, %v1757
    %1759 = vdwg.mxu0
    %1760 = vmatprep.subr.mxu0 0.0
    %1761 = vmatpush1.msra.mxu0 %v236
    %1762 = vmatprep.subr.mxu0 0.0
    %1763 = vmatpush1.msra.mxu0 %v239
    %1764 = vmatprep.subr.mxu0 0.0
    %1765 = vmatpush1.msra.mxu0 %v242
    %1766 = vmatprep.subr.mxu0 0.0
    %1767 = vmatpush1.msra.mxu0 %v245
    %1768 = vmatprep.subr.mxu0 0.0
    %1769 = vmatpush1.msra.mxu0 %v248
    %1770 = vmatprep.subr.mxu0 0.0
    %1771 = vmatpush1.msra.mxu0 %v251
    %1772 = vmatprep.subr.mxu0 0.0
    %1773 = vmatpush1.msra.mxu0 %v254
    %1774 = vmatprep.subr.mxu0 0.0
    %1775 = vmatpush1.msra.mxu0 %v257
    %1776 = vmatprep.subr.mxu0 0.0
    %1777 = vmatpush1.msra.mxu0 %v260
    %1778 = vmatprep.subr.mxu0 0.0
    %1779 = vmatpush1.msra.mxu0 %v263
    %1780 = vmatprep.subr.mxu0 0.0
    %1781 = vmatpush1.msra.mxu0 %v266
    %1782 = vmatprep.subr.mxu0 0.0
    %1783 = vmatpush1.msra.mxu0 %v269
    %1784 = vmatprep.subr.mxu0 0.0
    %1785 = vmatpush1.msra.mxu0 %v272
    %1786 = vmatprep.subr.mxu0 0.0
    %1787 = vmatpush1.msra.mxu0 %v275
    %1788 = vmatprep.subr.mxu0 0.0
    %1789 = vmatpush1.msra.mxu0 %v278
    %1790 = vmatprep.subr.mxu0 0.0
    %1791 = vmatpush1.msra.mxu0 %v281
    %1792 = vmatprep.subr.mxu0 0.0
    %1793 = vmatpush1.msra.mxu0 0.0
    %1794 = vmatprep.subr.mxu0 0.0
    %1795 = vmatpush1.msra.mxu0 0.0
    %1796 = vmatprep.subr.mxu0 0.0
    %1797 = vmatpush1.msra.mxu0 0.0
    %1798 = vmatprep.subr.mxu0 0.0
    %1799 = vmatpush1.msra.mxu0 0.0
    %1800 = vmatprep.subr.mxu0 0.0
    %1801 = vmatpush1.msra.mxu0 0.0
    %1802 = vmatprep.subr.mxu0 0.0
    %1803 = vmatpush1.msra.mxu0 0.0
    %1804 = vmatprep.subr.mxu0 0.0
    %1805 = vmatpush1.msra.mxu0 0.0
    %1806 = vmatprep.subr.mxu0 0.0
    %1807 = vmatpush1.msra.mxu0 0.0
    %1808 = vmatprep.subr.mxu0 0.0
    %1809 = vmatpush1.msra.mxu0 0.0
    %1810 = vmatprep.subr.mxu0 0.0
    %1811 = vmatpush1.msra.mxu0 0.0
    %1812 = vmatprep.subr.mxu0 0.0
    %1813 = vmatpush1.msra.mxu0 0.0
    %1814 = vmatprep.subr.mxu0 0.0
    %1815 = vmatpush1.msra.mxu0 0.0
    %1816 = vmatprep.subr.mxu0 0.0
    %1817 = vmatpush1.msra.mxu0 0.0
    %1818 = vmatprep.subr.mxu0 0.0
    %1819 = vmatpush1.msra.mxu0 0.0
    %1820 = vmatprep.subr.mxu0 0.0
    %1821 = vmatpush1.msra.mxu0 0.0
    %1822 = vmatprep.subr.mxu0 0.0
    %1823 = vmatpush1.msra.mxu0 0.0
    %1824 = vmatprep.mubr.f32.mxu0 0.0
    %1825 = vmatmul.mubr.f32.gmra.mrb[0].mxu0 %v1687
    %v1826 = vpop.f32.mrb[0].mxu0
    %v1827 = vadd.f32 0.0, %v1826
    %v1828 = vpop.f32.mrb[0].mxu0
    %1829 = vdwg.mxu0
    %v1831 = vrot.slane %v1756, 1
    %v1832 = vrot.slane %v1756, 2
    %v1835 = vadd.f32 %v149, %v1831
    %v1836 = vadd.f32 %v155, %v1832
    %v1837 = vmul.f32 %v1835, 0.5
    %v1838 = vmul.f32 %v1836, 0.5
    %v1839 = vtanh.pop %v1837
    %v1840 = vtanh.pop %v1838
    %v1841 = vmul.f32 %v1839, 0.5
    %v1842 = vmul.f32 %v1840, 0.5
    %v1843 = vadd.f32 %v1841, 0.5
    %v1844 = vadd.f32 %v1842, 0.5
    %v1846 = vrot.slane %v1758, 1
    %v1847 = vrot.slane %v1758, 2
    %v1850 = vadd.f32 %v151, %v1846
    %v1851 = vadd.f32 %v157, %v1847
    %v1852 = vmul.f32 %v1850, 0.5
    %v1853 = vmul.f32 %v1851, 0.5
    %v1854 = vtanh.pop %v1852
    %v1855 = vtanh.pop %v1853
    %v1856 = vmul.f32 %v1854, 0.5
    %v1857 = vmul.f32 %v1855, 0.5
    %v1858 = vadd.f32 %v1856, 0.5
    %v1859 = vadd.f32 %v1857, 0.5
    %v1860 = vadd.f32 %v1827, %v457
    %v1862 = vrot.slane %v1860, 1
    %v1863 = vrot.slane %v1860, 2
    %v1866 = vmul.f32 %v1843, %v1862
    %v1867 = vmul.f32 %v1844, %v1863
    %v1868 = vadd.f32 %v226, %v1866
    %v1869 = vadd.f32 %v231, %v1867
    %v1870 = vtanh.pop %v1868
    %v1871 = vtanh.pop %v1869
    %v1872 = vsub.f32 1.0, %v1858
    %v1873 = vsub.f32 1.0, %v1859
    %v1874 = vmul.f32 %v1872, %v1870
    %v1875 = vmul.f32 %v1873, %v1871
    %v1876 = vrot.slane %v1681, 7
    %v1877 = vrot.slane %v1682, 7
    %v1880 = vmul.f32 %v1858, %v1876
    %v1881 = vmul.f32 %v1859, %v1877
    %v1882 = vadd.f32 %v1874, %v1880
    %v1883 = vadd.f32 %v1875, %v1881
    %vm1884 = vcmask 1040384
    %v1885 = vsel %vm1884, %v480, %v677
    %v1886 = vsel %vm1884, %v481, %v678
    %vm1887 = vcmask 1041408
    %v1888 = vsel %vm1887, %v1885, %v877
    %v1889 = vsel %vm1887, %v1886, %v878
    %vm1890 = vcmask 1042432
    %v1891 = vsel %vm1890, %v1888, %v1078
    %v1892 = vsel %vm1890, %v1889, %v1079
    %vm1893 = vcmask 1043456
    %v1894 = vsel %vm1893, %v1891, %v1279
    %v1895 = vsel %vm1893, %v1892, %v1280
    %v1896 = vsel %vm72, %v1894, %v1480
    %v1897 = vsel %vm72, %v1895, %v1481
    %vm1898 = vcmask 1045504
    %v1899 = vsel %vm1898, %v1896, %v1681
    %v1900 = vsel %vm1898, %v1897, %v1682
    %vm1901 = vcmask 1046528
    %v1902 = vsel %vm1901, %v1899, %v1882
    %v1903 = vsel %vm1901, %v1900, %v1883
    %v1904 = vld [vmem:[%s6] sm:$0xff]
    %v1905 = vld [vmem:[%s6 + $0x8] sm:$0xff]
    %v1906 = vld [vmem:[%s6 + $0x10] sm:$0xff]
    %v1907 = vld [vmem:[%s6 + $0x18] sm:$0xff]
    %v1908 = vld [vmem:[%s6 + $0x20] sm:$0xff]
    %v1909 = vld [vmem:[%s6 + $0x28] sm:$0xff]
    %v1910 = vld [vmem:[%s6 + $0x30] sm:$0xff]
    %v1911 = vld [vmem:[%s6 + $0x38] sm:$0xff]
    %v1912 = vld [vmem:[%s6 + $0x40] sm:$0xff]
    %v1913 = vld [vmem:[%s6 + $0x48] sm:$0xff]
    %v1914 = vld [vmem:[%s6 + $0x50] sm:$0xff]
    %v1915 = vld [vmem:[%s6 + $0x58] sm:$0xff]
    %v1916 = vld [vmem:[%s6 + $0x60] sm:$0xff]
    %v1917 = vld [vmem:[%s6 + $0x68] sm:$0xff]
    %v1918 = vld [vmem:[%s6 + $0x70] sm:$0xff]
    %v1919 = vld [vmem:[%s6 + $0x78] sm:$0xff]
    %v1920 = vld [vmem:[%s7] sm:$0x1]
    %v1922 = vlaneseq
    %v1923 = vshrl.u32 %v1922, 7
    %v1924 = vsub.s32 0, %v1923
    %v1925 = vrot.slane %v1920, %v1924
    %1927 = vmatprep.subr.mxu0 0.0
    %1928 = vmatpush1.msra.mxu0 %v1904
    %1929 = vmatprep.subr.mxu0 0.0
    %1930 = vmatpush1.msra.mxu0 %v1905
    %1931 = vmatprep.subr.mxu0 0.0
    %1932 = vmatpush1.msra.mxu0 %v1906
    %1933 = vmatprep.subr.mxu0 0.0
    %1934 = vmatpush1.msra.mxu0 %v1907
    %1935 = vmatprep.subr.mxu0 0.0
    %1936 = vmatpush1.msra.mxu0 %v1908
    %1937 = vmatprep.subr.mxu0 0.0
    %1938 = vmatpush1.msra.mxu0 %v1909
    %1939 = vmatprep.subr.mxu0 0.0
    %1940 = vmatpush1.msra.mxu0 %v1910
    %1941 = vmatprep.subr.mxu0 0.0
    %1942 = vmatpush1.msra.mxu0 %v1911
    %1943 = vmatprep.subr.mxu0 0.0
    %1944 = vmatpush1.msra.mxu0 %v1912
    %1945 = vmatprep.subr.mxu0 0.0
    %1946 = vmatpush1.msra.mxu0 %v1913
    %1947 = vmatprep.subr.mxu0 0.0
    %1948 = vmatpush1.msra.mxu0 %v1914
    %1949 = vmatprep.subr.mxu0 0.0
    %1950 = vmatpush1.msra.mxu0 %v1915
    %1951 = vmatprep.subr.mxu0 0.0
    %1952 = vmatpush1.msra.mxu0 %v1916
    %1953 = vmatprep.subr.mxu0 0.0
    %1954 = vmatpush1.msra.mxu0 %v1917
    %1955 = vmatprep.subr.mxu0 0.0
    %1956 = vmatpush1.msra.mxu0 %v1918
    %1957 = vmatprep.subr.mxu0 0.0
    %1958 = vmatpush1.msra.mxu0 %v1919
    %1959 = vmatprep.subr.mxu0 0.0
    %1960 = vmatpush1.msra.mxu0 0.0
    %1961 = vmatprep.subr.mxu0 0.0
    %1962 = vmatpush1.msra.mxu0 0.0
    %1963 = vmatprep.subr.mxu0 0.0
    %1964 = vmatpush1.msra.mxu0 0.0
    %1965 = vmatprep.subr.mxu0 0.0
    %1966 = vmatpush1.msra.mxu0 0.0
    %1967 = vmatprep.subr.mxu0 0.0
    %1968 = vmatpush1.msra.mxu0 0.0
    %1969 = vmatprep.subr.mxu0 0.0
    %1970 = vmatpush1.msra.mxu0 0.0
    %1971 = vmatprep.subr.mxu0 0.0
    %1972 = vmatpush1.msra.mxu0 0.0
    %1973 = vmatprep.subr.mxu0 0.0
    %1974 = vmatpush1.msra.mxu0 0.0
    %1975 = vmatprep.subr.mxu0 0.0
    %1976 = vmatpush1.msra.mxu0 0.0
    %1977 = vmatprep.subr.mxu0 0.0
    %1978 = vmatpush1.msra.mxu0 0.0
    %1979 = vmatprep.subr.mxu0 0.0
    %1980 = vmatpush1.msra.mxu0 0.0
    %1981 = vmatprep.subr.mxu0 0.0
    %1982 = vmatpush1.msra.mxu0 0.0
    %1983 = vmatprep.subr.mxu0 0.0
    %1984 = vmatpush1.msra.mxu0 0.0
    %1985 = vmatprep.subr.mxu0 0.0
    %1986 = vmatpush1.msra.mxu0 0.0
    %1987 = vmatprep.subr.mxu0 0.0
    %1988 = vmatpush1.msra.mxu0 0.0
    %1989 = vmatprep.subr.mxu0 0.0
    %1990 = vmatpush1.msra.mxu0 0.0
    %1991 = vmatprep.mubr.f32.mxu0 0.0
    %1992 = vmatmul.mubr.f32.gmra.mrb[0].mxu0 %v1902
    %v1993 = vpop.f32.mrb[0].mxu0
    %v1994 = vadd.f32 %v1925, %v1993
    %v1995 = vpop.f32.mrb[0].mxu0
    %1996 = vmatprep.mubr.f32.mxu0 0.0
    %1997 = vmatmul.mubr.f32.gmra.mrb[0].mxu0 %v1903
    %v1998 = vpop.f32.mrb[0].mxu0
    %v1999 = vadd.f32 %v1925, %v1998
    %v2000 = vpop.f32.mrb[0].mxu0
    %2001 = vdwg.mxu0
    %v2002 = vtanh.pop %v1994
    %v2003 = vtanh.pop %v1999
    %2004 = vst.msk [vmem:[%s8] sm:$0xff] %vm65, %v2002
    %2005 = vst.msk [vmem:[%s8 + $0x8] sm:$0xff] %vm65, %v2003
    // Predicated region
    $region38: #{tpu_custom_call.1} parent=1 // pred_check
      _
    $region39: #{tpu_custom_call.1} parent=1 // pred_check_branch
      %2007 = sbr.rel (0) target = $region41
    $region40: #{tpu_custom_call.1} parent=1 // pred_region
      _
    $region41: #{tpu_custom_call.1} parent=1 // pred_fallthru
      _
    // Predicated region
    $region42: #{tpu_custom_call.1} parent=1 // pred_check
      _
    $region43: #{tpu_custom_call.1} parent=1 // pred_check_branch
      %2009 = sbr.rel (0) target = $region45
    $region44: #{tpu_custom_call.1} parent=1 // pred_region
      _
    $region45: #{tpu_custom_call.1} parent=1 // pred_fallthru
      _
    %2010 = vsyncpa [#allocation3], 1

</llo_original>
